<compile_context>
chip_gen: v7x
topology: tpu7x:2x2x1
jax: 0.10.0
libtpu: 0.0.40
codegen_flags: <defaults>
</compile_context>

<pallas_src>
import math
import functools

import jax
import jax.numpy as jnp
from jax import lax
from jax.experimental import pallas as pl
from jax.experimental.pallas import tpu as pltpu


# ----------------------------- in-kernel helpers -----------------------------

def _layernorm(x, gamma, beta, eps=1e-5):
    # PyTorch LayerNorm: biased variance over the last dim, eps inside rsqrt.  (f32)
    mu = jnp.mean(x, axis=-1, keepdims=True)
    var = jnp.mean((x - mu) ** 2, axis=-1, keepdims=True)
    return (x - mu) * lax.rsqrt(var + eps) * gamma + beta


def _gelu_exact(x):
    # nn.GELU() default = exact (erf) formulation.  (f32)
    return 0.5 * x * (1.0 + lax.erf(x * (1.0 / math.sqrt(2.0))))


# --------------------------------- kernel ------------------------------------

def transformer_block_kernel(
    x_ref,          # (S, E)  f32   one batch element per grid step
    wqkv_ref,       # (E, 3E) bf16  fused QKV projection
    bqkv_ref,       # (1, 3E) f32
    wo_ref,         # (E, E)  bf16
    w1_ref,         # (E, F)  bf16
    b1_ref,         # (1, F)  f32
    w2_ref,         # (F, E)  bf16
    packed_ref,     # (6, E)  f32   rows: bo, g1, be1, b2, g2, be2
    o_ref,          # (S, E)  f32
    *, num_heads,
):
    x = x_ref[...]                                   # (S, E) f32
    S, E = x.shape
    H = num_heads
    D = E // H
    scale = 1.0 / math.sqrt(D)

    # hoist small params (loaded exactly once)
    packed = packed_ref[...]
    bo, g1, be1 = packed[0:1, :], packed[1:2, :], packed[2:3, :]
    b2, g2, be2 = packed[3:4, :], packed[4:5, :], packed[5:6, :]
    bqkv = bqkv_ref[...]
    b1 = b1_ref[...]

    xb = x.astype(jnp.bfloat16)

    # --- fused Q/K/V projection: one MXU matmul (bf16 operands, f32 accumulate) ---
    qkv = jnp.dot(xb, wqkv_ref[...], preferred_element_type=jnp.float32) + bqkv   # (S, 3E)

    def heads(m):                                    # (S, E) -> (H, S, D)
        return m.reshape(S, H, D).transpose(1, 0, 2)

    q = heads(qkv[:, 0:E]).astype(jnp.bfloat16)
    k = heads(qkv[:, E:2 * E]).astype(jnp.bfloat16)
    v = heads(qkv[:, 2 * E:3 * E]).astype(jnp.bfloat16)

    # --- attention: head-batched matmuls, softmax stats in f32 ---
    scores = jnp.einsum('hqd,hkd->hqk', q, k,
                        preferred_element_type=jnp.float32) * scale               # (H, S, S)
    m = jnp.max(scores, axis=-1, keepdims=True)
    p = jnp.exp(scores - m)
    p = p * pl.reciprocal(jnp.sum(p, axis=-1, keepdims=True), approx=True)

    o = jnp.einsum('hqk,hkd->hqd', p.astype(jnp.bfloat16), v,
                   preferred_element_type=jnp.float32)                            # (H, S, D)
    attn = o.transpose(1, 0, 2).reshape(S, E)
    attn = jnp.dot(attn.astype(jnp.bfloat16), wo_ref[...],
                   preferred_element_type=jnp.float32) + bo

    # --- residual + LayerNorm 1 (f32) ---
    x1 = _layernorm(x + attn, g1, be1)

    # --- feed-forward: Linear -> GELU -> Linear (bf16 MXU operands, f32 elementwise) ---
    h = jnp.dot(x1.astype(jnp.bfloat16), w1_ref[...],
                preferred_element_type=jnp.float32) + b1
    h = _gelu_exact(h)
    ff = jnp.dot(h.astype(jnp.bfloat16), w2_ref[...],
                 preferred_element_type=jnp.float32) + b2

    # --- residual + LayerNorm 2, direct (S, E) store ---
    o_ref[...] = _layernorm(x1 + ff, g2, be2)


# ------------------------- parameter preparation (once) ------------------------

def prepare_params(params):
    """Fuse QKV, cast matmul weights to bf16, pack tiny per-channel params. Call once."""
    wqkv = jnp.concatenate([params["wq"], params["wk"], params["wv"]],
                           axis=1).astype(jnp.bfloat16)                 # (E, 3E)
    bqkv = jnp.concatenate([params["bq"], params["bk"], params["bv"]],
                           axis=1).astype(jnp.float32)                  # (1, 3E)
    packed = jnp.concatenate(
        [params["bo"], params["g1"], params["be1"],
         params["b2"], params["g2"], params["be2"]], axis=0).astype(jnp.float32)  # (6, E)
    return {
        "wqkv": wqkv, "bqkv": bqkv,
        "wo": params["wo"].astype(jnp.bfloat16),
        "w1": params["w1"].astype(jnp.bfloat16),
        "b1": params["b1"].astype(jnp.float32),
        "w2": params["w2"].astype(jnp.bfloat16),
        "packed": packed,
    }


# -------------------------------- wrapper -------------------------------------

def transformer_block(x, prepared, num_heads):
    B, S, E = x.shape
    F = prepared["w1"].shape[1]
    H = num_heads
    D = E // H

    kernel = functools.partial(transformer_block_kernel, num_heads=num_heads)

    # Advisory cost estimate for XLA's scheduler.
    flops = B * (2 * S * E * 3 * E          # QKV projection
                 + 4 * H * S * S * D        # attention score + PV matmuls
                 + 2 * S * E * E            # output projection
                 + 4 * S * E * F)           # feed-forward
    transcendentals = B * (H * S * S + S * F + 4 * S)
    bytes_accessed = (
        2 * x.size * 4                                                   # x in + out
        + 2 * (prepared["wqkv"].size + prepared["wo"].size
               + prepared["w1"].size + prepared["w2"].size)              # bf16 weights
        + 4 * (prepared["bqkv"].size + prepared["b1"].size + prepared["packed"].size))

    def w_spec(arr):
        # Full-array block, constant index_map -> DMA'd once, resident across grid steps.
        return pl.BlockSpec(arr.shape, lambda b, _nd=arr.ndim: (0,) * _nd)

    grid_spec = pltpu.PrefetchScalarGridSpec(
        num_scalar_prefetch=0,
        grid=(B,),
        in_specs=[
            pl.BlockSpec((None, S, E), lambda b: (b, 0, 0)),   # x: one batch / step
            w_spec(prepared["wqkv"]),
            w_spec(prepared["bqkv"]),
            w_spec(prepared["wo"]),
            w_spec(prepared["w1"]),
            w_spec(prepared["b1"]),
            w_spec(prepared["w2"]),
            w_spec(prepared["packed"]),
        ],
        out_specs=pl.BlockSpec((None, S, E), lambda b: (b, 0, 0)),
    )

    out = pl.pallas_call(
        kernel,
        out_shape=jax.ShapeDtypeStruct((B, S, E), jnp.float32),
        grid_spec=grid_spec,
        compiler_params=pltpu.CompilerParams(
            dimension_semantics=("parallel",),   # shards batch across TCs on v7x
        ),
        cost_estimate=pl.CostEstimate(
            flops=flops, transcendentals=transcendentals, bytes_accessed=bytes_accessed),
    )(x, prepared["wqkv"], prepared["bqkv"], prepared["wo"],
      prepared["w1"], prepared["b1"], prepared["w2"], prepared["packed"])
    return out


# --------------------------- pure-JAX reference --------------------------------

def transformer_block_ref(x, params, num_heads):
    B, S, E = x.shape
    D = E // num_heads
    scale = 1.0 / math.sqrt(D)

    def ln(v, g, b):
        mu = jnp.mean(v, axis=-1, keepdims=True)
        var = jnp.mean((v - mu) ** 2, axis=-1, keepdims=True)
        return (v - mu) * lax.rsqrt(var + 1e-5) * g + b

    q = x @ params["wq"] + params["bq"]
    k = x @ params["wk"] + params["bk"]
    v = x @ params["wv"] + params["bv"]
    qh = q.reshape(B, S, num_heads, D).transpose(0, 2, 1, 3)
    kh = k.reshape(B, S, num_heads, D).transpose(0, 2, 1, 3)
    vh = v.reshape(B, S, num_heads, D).transpose(0, 2, 1, 3)
    s = jnp.einsum("bhqd,bhkd->bhqk", qh, kh) * scale
    p = jax.nn.softmax(s, axis=-1)
    o = jnp.einsum("bhqk,bhkd->bhqd", p, vh).transpose(0, 2, 1, 3).reshape(B, S, E)
    attn = o @ params["wo"] + params["bo"]
    x1 = ln(x + attn, params["g1"], params["be1"])
    h = x1 @ params["w1"] + params["b1"]
    h = 0.5 * h * (1.0 + lax.erf(h / math.sqrt(2.0)))
    ff = h @ params["w2"] + params["b2"]
    return ln(x1 + ff, params["g2"], params["be2"])


# ----------------------------------- main --------------------------------------

if __name__ == "__main__":
    B, S, E, H, F = 2, 8, 32, 4, 64   # batch, seq, embed_dim, num_heads, ff_dim
    key = jax.random.PRNGKey(0)
    ks = jax.random.split(key, 16)

    def init(k, shape, scale=0.1):
        return (scale * jax.random.normal(k, shape)).astype(jnp.float32)

    params = {
        # attention in-projection (pre-transposed: y = x @ W + b)
        "wq": init(ks[0], (E, E)), "wk": init(ks[1], (E, E)), "wv": init(ks[2], (E, E)),
        "bq": init(ks[3], (1, E)), "bk": init(ks[4], (1, E)), "bv": init(ks[5], (1, E)),
        # attention out-projection
        "wo": init(ks[6], (E, E)), "bo": init(ks[7], (1, E)),
        # LayerNorm 1
        "g1": jnp.ones((1, E), jnp.float32), "be1": jnp.zeros((1, E), jnp.float32),
        # feed-forward
        "w1": init(ks[8], (E, F)), "b1": init(ks[9], (1, F)),
        "w2": init(ks[10], (F, E)), "b2": init(ks[11], (1, E)),
        # LayerNorm 2
        "g2": jnp.ones((1, E), jnp.float32), "be2": jnp.zeros((1, E), jnp.float32),
    }

    x = jax.random.normal(ks[12], (B, S, E), dtype=jnp.float32)

    prepared = prepare_params(params)      # fused/bf16 weights, computed once
    out = transformer_block(x, prepared, num_heads=H)
    out = jax.block_until_ready(out)

    ref = transformer_block_ref(x, params, num_heads=H)
    assert out.shape == (B, S, E)
    # Tolerance covers bf16 matmul operands + EUP approximate reciprocal in the softmax.
    err = jnp.max(jnp.abs(out - ref))
    assert err < 5e-2, f"max abs err = {err}"

    print("KERNEL_OK")
</pallas_src>

<mosaic_0001>
module attributes {stable_mosaic.version = 11 : i64} {
  func.func @transformer_block_kernel(%arg0: i32, %arg1: memref<1x8x32xf32, #tpu.memory_space<vmem>>, %arg2: memref<32x96xbf16, #tpu.memory_space<vmem>>, %arg3: memref<1x96xf32, #tpu.memory_space<vmem>>, %arg4: memref<32x32xbf16, #tpu.memory_space<vmem>>, %arg5: memref<32x64xbf16, #tpu.memory_space<vmem>>, %arg6: memref<1x64xf32, #tpu.memory_space<vmem>>, %arg7: memref<64x32xbf16, #tpu.memory_space<vmem>>, %arg8: memref<6x32xf32, #tpu.memory_space<vmem>>, %arg9: memref<1x8x32xf32, #tpu.memory_space<vmem>>) attributes {dimension_semantics = [#tpu.dimension_semantics<parallel>], iteration_bounds = array<i64: 2>, scalar_prefetch = 0 : i64, scratch_operands = 0 : i64, tpu.core_type = #tpu.core_type<tc>, window_params = [{transform_indices = @transform_0, window_bounds = array<i64: 1, 8, 32>}, {pipeline_mode = #tpu.pipeline_mode<synchronous>, transform_indices = @transform_1, window_bounds = array<i64: 32, 96>}, {pipeline_mode = #tpu.pipeline_mode<synchronous>, transform_indices = @transform_2, window_bounds = array<i64: 1, 96>}, {pipeline_mode = #tpu.pipeline_mode<synchronous>, transform_indices = @transform_3, window_bounds = array<i64: 32, 32>}, {pipeline_mode = #tpu.pipeline_mode<synchronous>, transform_indices = @transform_4, window_bounds = array<i64: 32, 64>}, {pipeline_mode = #tpu.pipeline_mode<synchronous>, transform_indices = @transform_5, window_bounds = array<i64: 1, 64>}, {pipeline_mode = #tpu.pipeline_mode<synchronous>, transform_indices = @transform_6, window_bounds = array<i64: 64, 32>}, {pipeline_mode = #tpu.pipeline_mode<synchronous>, transform_indices = @transform_7, window_bounds = array<i64: 6, 32>}, {transform_indices = @transform_8, window_bounds = array<i64: 1, 8, 32>}]} {
    %c0 = arith.constant 0 : index
    %c0_0 = arith.constant 0 : index
    %c0_1 = arith.constant 0 : index
    %0 = vector.load %arg1[%c0, %c0_0, %c0_1] : memref<1x8x32xf32, #tpu.memory_space<vmem>>, vector<1x8x32xf32>
    %1 = vector.shape_cast %0 : vector<1x8x32xf32> to vector<8x32xf32>
    %c0_2 = arith.constant 0 : index
    %c0_3 = arith.constant 0 : index
    %2 = vector.load %arg8[%c0_2, %c0_3] : memref<6x32xf32, #tpu.memory_space<vmem>>, vector<6x32xf32>
    %3 = vector.extract_strided_slice %2 {offsets = [0, 0], sizes = [1, 32], strides = [1, 1]} : vector<6x32xf32> to vector<1x32xf32>
    %4 = vector.extract_strided_slice %2 {offsets = [1, 0], sizes = [1, 32], strides = [1, 1]} : vector<6x32xf32> to vector<1x32xf32>
    %5 = vector.extract_strided_slice %2 {offsets = [2, 0], sizes = [1, 32], strides = [1, 1]} : vector<6x32xf32> to vector<1x32xf32>
    %6 = vector.extract_strided_slice %2 {offsets = [3, 0], sizes = [1, 32], strides = [1, 1]} : vector<6x32xf32> to vector<1x32xf32>
    %7 = vector.extract_strided_slice %2 {offsets = [4, 0], sizes = [1, 32], strides = [1, 1]} : vector<6x32xf32> to vector<1x32xf32>
    %8 = vector.extract_strided_slice %2 {offsets = [5, 0], sizes = [1, 32], strides = [1, 1]} : vector<6x32xf32> to vector<1x32xf32>
    %c0_4 = arith.constant 0 : index
    %c0_5 = arith.constant 0 : index
    %9 = vector.load %arg3[%c0_4, %c0_5] : memref<1x96xf32, #tpu.memory_space<vmem>>, vector<1x96xf32>
    %c0_6 = arith.constant 0 : index
    %c0_7 = arith.constant 0 : index
    %10 = vector.load %arg6[%c0_6, %c0_7] : memref<1x64xf32, #tpu.memory_space<vmem>>, vector<1x64xf32>
    %11 = arith.truncf %1 : vector<8x32xf32> to vector<8x32xbf16>
    %c0_8 = arith.constant 0 : index
    %c0_9 = arith.constant 0 : index
    %12 = vector.load %arg2[%c0_8, %c0_9] : memref<32x96xbf16, #tpu.memory_space<vmem>>, vector<32x96xbf16>
    %cst = arith.constant dense<0.000000e+00> : vector<8x96xf32>
    %13 = tpu.matmul %11, %12, %cst {dimension_numbers = #tpu.dot_dimension_numbers<[1], [0], [0], [1], [0, 0, 1, 1], [], []>} : vector<8x32xbf16>, vector<32x96xbf16>, vector<8x96xf32> -> vector<8x96xf32>
    %14 = vector.broadcast %9 : vector<1x96xf32> to vector<8x96xf32>
    %15 = arith.addf %13, %14 : vector<8x96xf32>
    %16 = vector.extract_strided_slice %15 {offsets = [0, 0], sizes = [8, 32], strides = [1, 1]} : vector<8x96xf32> to vector<8x32xf32>
    %17 = vector.shape_cast %16 : vector<8x32xf32> to vector<8x4x8xf32>
    %18 = tpu.transpose %17, [1, 0, 2] : vector<8x4x8xf32> -> vector<4x8x8xf32>
    %19 = arith.truncf %18 : vector<4x8x8xf32> to vector<4x8x8xbf16>
    %20 = vector.extract_strided_slice %15 {offsets = [0, 32], sizes = [8, 32], strides = [1, 1]} : vector<8x96xf32> to vector<8x32xf32>
    %21 = vector.shape_cast %20 : vector<8x32xf32> to vector<8x4x8xf32>
    %22 = tpu.transpose %21, [1, 0, 2] : vector<8x4x8xf32> -> vector<4x8x8xf32>
    %23 = arith.truncf %22 : vector<4x8x8xf32> to vector<4x8x8xbf16>
    %24 = vector.extract_strided_slice %15 {offsets = [0, 64], sizes = [8, 32], strides = [1, 1]} : vector<8x96xf32> to vector<8x32xf32>
    %25 = vector.shape_cast %24 : vector<8x32xf32> to vector<8x4x8xf32>
    %26 = tpu.transpose %25, [1, 0, 2] : vector<8x4x8xf32> -> vector<4x8x8xf32>
    %27 = arith.truncf %26 : vector<4x8x8xf32> to vector<4x8x8xbf16>
    "tpu.trace_start"() <{level = 10 : i32, message = "hqd,hkd->hqk"}> : () -> ()
    %cst_10 = arith.constant dense<0.000000e+00> : vector<4x8x8xf32>
    %28 = tpu.matmul %19, %23, %cst_10 {dimension_numbers = #tpu.dot_dimension_numbers<[2], [2], [1], [1], [0, 0, 0, 1, 1, 1], [0], [0]>} : vector<4x8x8xbf16>, vector<4x8x8xbf16>, vector<4x8x8xf32> -> vector<4x8x8xf32>
    "tpu.trace_stop"() : () -> ()
    %cst_11 = arith.constant 0.353553385 : f32
    %29 = vector.broadcast %cst_11 : f32 to vector<4x8x8xf32>
    %30 = arith.mulf %28, %29 : vector<4x8x8xf32>
    %cst_12 = arith.constant dense<0xFF800000> : vector<4x8xf32>
    %31 = vector.multi_reduction <maximumf>, %30, %cst_12 [2] : vector<4x8x8xf32> to vector<4x8xf32>
    %32 = vector.shape_cast %31 : vector<4x8xf32> to vector<4x8x1xf32>
    %33 = vector.broadcast %32 : vector<4x8x1xf32> to vector<4x8x8xf32>
    %34 = arith.subf %30, %33 : vector<4x8x8xf32>
    %35 = math.exp %34 : vector<4x8x8xf32>
    %cst_13 = arith.constant dense<0.000000e+00> : vector<4x8xf32>
    %36 = vector.multi_reduction <add>, %35, %cst_13 [2] : vector<4x8x8xf32> to vector<4x8xf32>
    %37 = vector.shape_cast %36 : vector<4x8xf32> to vector<4x8x1xf32>
    %38 = tpu.reciprocal %37 {approx = true} : vector<4x8x1xf32> -> vector<4x8x1xf32>
    %39 = vector.broadcast %38 : vector<4x8x1xf32> to vector<4x8x8xf32>
    %40 = arith.mulf %35, %39 : vector<4x8x8xf32>
    %41 = arith.truncf %40 : vector<4x8x8xf32> to vector<4x8x8xbf16>
    "tpu.trace_start"() <{level = 10 : i32, message = "hqk,hkd->hqd"}> : () -> ()
    %cst_14 = arith.constant dense<0.000000e+00> : vector<4x8x8xf32>
    %42 = tpu.matmul %41, %27, %cst_14 {dimension_numbers = #tpu.dot_dimension_numbers<[2], [1], [1], [2], [0, 0, 0, 1, 1, 2], [0], [0]>} : vector<4x8x8xbf16>, vector<4x8x8xbf16>, vector<4x8x8xf32> -> vector<4x8x8xf32>
    "tpu.trace_stop"() : () -> ()
    %43 = tpu.transpose %42, [1, 0, 2] : vector<4x8x8xf32> -> vector<8x4x8xf32>
    %44 = vector.shape_cast %43 : vector<8x4x8xf32> to vector<8x32xf32>
    %45 = arith.truncf %44 : vector<8x32xf32> to vector<8x32xbf16>
    %c0_15 = arith.constant 0 : index
    %c0_16 = arith.constant 0 : index
    %46 = vector.load %arg4[%c0_15, %c0_16] : memref<32x32xbf16, #tpu.memory_space<vmem>>, vector<32x32xbf16>
    %cst_17 = arith.constant dense<0.000000e+00> : vector<8x32xf32>
    %47 = tpu.matmul %45, %46, %cst_17 {dimension_numbers = #tpu.dot_dimension_numbers<[1], [0], [0], [1], [0, 0, 1, 1], [], []>} : vector<8x32xbf16>, vector<32x32xbf16>, vector<8x32xf32> -> vector<8x32xf32>
    %48 = vector.broadcast %3 : vector<1x32xf32> to vector<8x32xf32>
    %49 = arith.addf %47, %48 : vector<8x32xf32>
    %50 = arith.addf %1, %49 : vector<8x32xf32>
    %cst_18 = arith.constant dense<0.000000e+00> : vector<8xf32>
    %51 = vector.multi_reduction <add>, %50, %cst_18 [1] : vector<8x32xf32> to vector<8xf32>
    %52 = vector.shape_cast %51 : vector<8xf32> to vector<8x1xf32>
    %cst_19 = arith.constant 3.200000e+01 : f32
    %53 = vector.broadcast %cst_19 : f32 to vector<8x1xf32>
    %54 = arith.divf %52, %53 : vector<8x1xf32>
    %55 = vector.broadcast %54 : vector<8x1xf32> to vector<8x32xf32>
    %56 = arith.subf %50, %55 : vector<8x32xf32>
    %57 = arith.mulf %56, %56 : vector<8x32xf32>
    %cst_20 = arith.constant dense<0.000000e+00> : vector<8xf32>
    %58 = vector.multi_reduction <add>, %57, %cst_20 [1] : vector<8x32xf32> to vector<8xf32>
    %59 = vector.shape_cast %58 : vector<8xf32> to vector<8x1xf32>
    %cst_21 = arith.constant 3.200000e+01 : f32
    %60 = vector.broadcast %cst_21 : f32 to vector<8x1xf32>
    %61 = arith.divf %59, %60 : vector<8x1xf32>
    %62 = vector.broadcast %54 : vector<8x1xf32> to vector<8x32xf32>
    %63 = arith.subf %50, %62 : vector<8x32xf32>
    %cst_22 = arith.constant 9.99999974E-6 : f32
    %64 = vector.broadcast %cst_22 : f32 to vector<8x1xf32>
    %65 = arith.addf %61, %64 : vector<8x1xf32>
    %66 = math.rsqrt %65 : vector<8x1xf32>
    %67 = vector.broadcast %66 : vector<8x1xf32> to vector<8x32xf32>
    %68 = arith.mulf %63, %67 : vector<8x32xf32>
    %69 = vector.broadcast %4 : vector<1x32xf32> to vector<8x32xf32>
    %70 = arith.mulf %68, %69 : vector<8x32xf32>
    %71 = vector.broadcast %5 : vector<1x32xf32> to vector<8x32xf32>
    %72 = arith.addf %70, %71 : vector<8x32xf32>
    %73 = arith.truncf %72 : vector<8x32xf32> to vector<8x32xbf16>
    %c0_23 = arith.constant 0 : index
    %c0_24 = arith.constant 0 : index
    %74 = vector.load %arg5[%c0_23, %c0_24] : memref<32x64xbf16, #tpu.memory_space<vmem>>, vector<32x64xbf16>
    %cst_25 = arith.constant dense<0.000000e+00> : vector<8x64xf32>
    %75 = tpu.matmul %73, %74, %cst_25 {dimension_numbers = #tpu.dot_dimension_numbers<[1], [0], [0], [1], [0, 0, 1, 1], [], []>} : vector<8x32xbf16>, vector<32x64xbf16>, vector<8x64xf32> -> vector<8x64xf32>
    %76 = vector.broadcast %10 : vector<1x64xf32> to vector<8x64xf32>
    %77 = arith.addf %75, %76 : vector<8x64xf32>
    %cst_26 = arith.constant 5.000000e-01 : f32
    %78 = vector.broadcast %cst_26 : f32 to vector<8x64xf32>
    %79 = arith.mulf %78, %77 : vector<8x64xf32>
    %cst_27 = arith.constant 0.707106769 : f32
    %80 = vector.broadcast %cst_27 : f32 to vector<8x64xf32>
    %81 = arith.mulf %77, %80 : vector<8x64xf32>
    %82 = math.erf %81 : vector<8x64xf32>
    %cst_28 = arith.constant 1.000000e+00 : f32
    %83 = vector.broadcast %cst_28 : f32 to vector<8x64xf32>
    %84 = arith.addf %83, %82 : vector<8x64xf32>
    %85 = arith.mulf %79, %84 : vector<8x64xf32>
    %86 = arith.truncf %85 : vector<8x64xf32> to vector<8x64xbf16>
    %c0_29 = arith.constant 0 : index
    %c0_30 = arith.constant 0 : index
    %87 = vector.load %arg7[%c0_29, %c0_30] : memref<64x32xbf16, #tpu.memory_space<vmem>>, vector<64x32xbf16>
    %cst_31 = arith.constant dense<0.000000e+00> : vector<8x32xf32>
    %88 = tpu.matmul %86, %87, %cst_31 {dimension_numbers = #tpu.dot_dimension_numbers<[1], [0], [0], [1], [0, 0, 1, 1], [], []>} : vector<8x64xbf16>, vector<64x32xbf16>, vector<8x32xf32> -> vector<8x32xf32>
    %89 = vector.broadcast %6 : vector<1x32xf32> to vector<8x32xf32>
    %90 = arith.addf %88, %89 : vector<8x32xf32>
    %91 = arith.addf %72, %90 : vector<8x32xf32>
    %cst_32 = arith.constant dense<0.000000e+00> : vector<8xf32>
    %92 = vector.multi_reduction <add>, %91, %cst_32 [1] : vector<8x32xf32> to vector<8xf32>
    %93 = vector.shape_cast %92 : vector<8xf32> to vector<8x1xf32>
    %cst_33 = arith.constant 3.200000e+01 : f32
    %94 = vector.broadcast %cst_33 : f32 to vector<8x1xf32>
    %95 = arith.divf %93, %94 : vector<8x1xf32>
    %96 = vector.broadcast %95 : vector<8x1xf32> to vector<8x32xf32>
    %97 = arith.subf %91, %96 : vector<8x32xf32>
    %98 = arith.mulf %97, %97 : vector<8x32xf32>
    %cst_34 = arith.constant dense<0.000000e+00> : vector<8xf32>
    %99 = vector.multi_reduction <add>, %98, %cst_34 [1] : vector<8x32xf32> to vector<8xf32>
    %100 = vector.shape_cast %99 : vector<8xf32> to vector<8x1xf32>
    %cst_35 = arith.constant 3.200000e+01 : f32
    %101 = vector.broadcast %cst_35 : f32 to vector<8x1xf32>
    %102 = arith.divf %100, %101 : vector<8x1xf32>
    %103 = vector.broadcast %95 : vector<8x1xf32> to vector<8x32xf32>
    %104 = arith.subf %91, %103 : vector<8x32xf32>
    %cst_36 = arith.constant 9.99999974E-6 : f32
    %105 = vector.broadcast %cst_36 : f32 to vector<8x1xf32>
    %106 = arith.addf %102, %105 : vector<8x1xf32>
    %107 = math.rsqrt %106 : vector<8x1xf32>
    %108 = vector.broadcast %107 : vector<8x1xf32> to vector<8x32xf32>
    %109 = arith.mulf %104, %108 : vector<8x32xf32>
    %110 = vector.broadcast %7 : vector<1x32xf32> to vector<8x32xf32>
    %111 = arith.mulf %109, %110 : vector<8x32xf32>
    %112 = vector.broadcast %8 : vector<1x32xf32> to vector<8x32xf32>
    %113 = arith.addf %111, %112 : vector<8x32xf32>
    %c0_37 = arith.constant 0 : index
    %c0_38 = arith.constant 0 : index
    %c0_39 = arith.constant 0 : index
    %114 = vector.load %arg9[%c0_37, %c0_38, %c0_39] : memref<1x8x32xf32, #tpu.memory_space<vmem>>, vector<1x8x32xf32>
    %115 = vector.shape_cast %114 : vector<1x8x32xf32> to vector<8x32xf32>
    %116 = vector.shape_cast %113 : vector<8x32xf32> to vector<1x8x32xf32>
    tpu.vector_store %arg9[%c0_37, %c0_38, %c0_39], %116 {strides = array<i32>} : memref<1x8x32xf32, #tpu.memory_space<vmem>>, vector<1x8x32xf32>,
    return
  }
  func.func @transform_0(%arg0: i32) -> (i32, i32, i32) {
    %c0_i32 = arith.constant 0 : i32
    %c0_i32_0 = arith.constant 0 : i32
    %c0_i32_1 = arith.constant 0 : i32
    return %arg0, %c0_i32, %c0_i32_0 : i32, i32, i32
  }
  func.func @transform_1(%arg0: i32) -> (i32, i32) {
    %c0_i32 = arith.constant 0 : i32
    %c0_i32_0 = arith.constant 0 : i32
    %c0_i32_1 = arith.constant 0 : i32
    return %c0_i32, %c0_i32_0 : i32, i32
  }
  func.func @transform_2(%arg0: i32) -> (i32, i32) {
    %c0_i32 = arith.constant 0 : i32
    %c0_i32_0 = arith.constant 0 : i32
    %c0_i32_1 = arith.constant 0 : i32
    return %c0_i32, %c0_i32_0 : i32, i32
  }
  func.func @transform_3(%arg0: i32) -> (i32, i32) {
    %c0_i32 = arith.constant 0 : i32
    %c0_i32_0 = arith.constant 0 : i32
    %c0_i32_1 = arith.constant 0 : i32
    return %c0_i32, %c0_i32_0 : i32, i32
  }
  func.func @transform_4(%arg0: i32) -> (i32, i32) {
    %c0_i32 = arith.constant 0 : i32
    %c0_i32_0 = arith.constant 0 : i32
    %c0_i32_1 = arith.constant 0 : i32
    return %c0_i32, %c0_i32_0 : i32, i32
  }
  func.func @transform_5(%arg0: i32) -> (i32, i32) {
    %c0_i32 = arith.constant 0 : i32
    %c0_i32_0 = arith.constant 0 : i32
    %c0_i32_1 = arith.constant 0 : i32
    return %c0_i32, %c0_i32_0 : i32, i32
  }
  func.func @transform_6(%arg0: i32) -> (i32, i32) {
    %c0_i32 = arith.constant 0 : i32
    %c0_i32_0 = arith.constant 0 : i32
    %c0_i32_1 = arith.constant 0 : i32
    return %c0_i32, %c0_i32_0 : i32, i32
  }
  func.func @transform_7(%arg0: i32) -> (i32, i32) {
    %c0_i32 = arith.constant 0 : i32
    %c0_i32_0 = arith.constant 0 : i32
    %c0_i32_1 = arith.constant 0 : i32
    return %c0_i32, %c0_i32_0 : i32, i32
  }
  func.func @transform_8(%arg0: i32) -> (i32, i32, i32) {
    %c0_i32 = arith.constant 0 : i32
    %c0_i32_0 = arith.constant 0 : i32
    %c0_i32_1 = arith.constant 0 : i32
    return %arg0, %c0_i32, %c0_i32_0 : i32, i32, i32
  }
}

</mosaic_0001>

<llo_original>
// kernel: tpu_custom_call.1
$region0: #{tpu_custom_call.1}
  #allocation0 [shape = 'u32[]', space=smem, size = 0x4, offset = 0x4, fixed_abs, tag = 'smem constant byte address 0x4 - core index']
  #allocation1 [shape = 'u32[144,128]{1,0:T(1,128)}', space=vmem, size = 0x12000, scoped, tag = 'internal scratch']
  %s0 = inlined_call_operand.vmem [shape: f32[2,8,32], index: 0, kind: input, shape index: {}]
  %s1 = inlined_call_operand.vmem [shape: bf16[32,96], index: 1, kind: input, shape index: {}]
  %s2 = inlined_call_operand.vmem [shape: f32[1,96], index: 2, kind: input, shape index: {}]
  %s3 = inlined_call_operand.vmem [shape: bf16[32,32], index: 3, kind: input, shape index: {}]
  %s4 = inlined_call_operand.hbm [shape: bf16[32,64], index: 4, kind: input, shape index: {}]
  %s5 = inlined_call_operand.vmem [shape: f32[1,64], index: 5, kind: input, shape index: {}]
  %s6 = inlined_call_operand.vmem [shape: bf16[64,32], index: 6, kind: input, shape index: {}]
  %s7 = inlined_call_operand.vmem [shape: f32[6,32], index: 7, kind: input, shape index: {}]
  %s8 = inlined_call_operand.hbm [shape: f32[2,8,32], index: 8, kind: output, shape index: {}]
  %s9 = sld [smem:[#allocation0]]
  $region69: #{tpu_custom_call.1} parent=0
    _
  %s11 = ssub.s32 1, %s9
  %s12 = scalar_select 0, %s11, %s9
  $region1: #{tpu_custom_call.1} parent=0
    #allocation2 [shape = 'u8[8192]{0}', space=vmem, size = 0x2000, scoped, tag = 'input window, operand 4, single buffered']
    #allocation3 [shape = 's32[2]{0}', space=sflag, size = 0x8, scoped, tag = 'scoped memory for tpu_custom_call.1']
    #allocation4 [shape = 's32[2]{0}', space=sflag, size = 0x8, scoped, tag = 'scoped memory for tpu_custom_call.1']
    #allocation5 [shape = 'u8[8192]{0}', space=vmem, size = 0x2000, scoped, tag = 'output window, operand 0']
    %13 = vsyncpa [#allocation3], 0
    %14 = vsyncpa [#allocation4], 0
    %s15 = scalar_lea.sflag [#allocation4], 1
    %16 = vsyncpa %s15, 0
    loop: start=0, step=1, limit=4
    $region2: #{tpu_custom_call.1} parent=1 // loop_pre_header
      _
    $region3: #{tpu_custom_call.1} parent=1 // loop_header
      %s18 = sphi 0, %s22
      %p19 = scmp.ge.s32.totalorder %s18, 4
      %s28 = sphi 0, %s30
      %s31 = sphi 0, %s28
      %s32 = sphi 0, %s31
      %s48 = sphi 0, %s32
      %s52 = sphi 0, %s52
      %s54 = sphi 0, %s52
      %s55 = sphi 0, %s54
      %s69 = sphi 0, %s55
      %s73 = sphi 0, %s73
      %s75 = sphi 0, %s73
      %s76 = sphi 0, %s75
      %s90 = sphi 0, %s76
      %s94 = sphi 0, %s94
      %s96 = sphi 0, %s94
      %s97 = sphi 0, %s96
      %s111 = sphi 0, %s97
      %s115 = sphi 0, %s115
      %s117 = sphi 0, %s115
      %s118 = sphi 0, %s117
      %s132 = sphi 0, %s118
      %s136 = sphi 0, %s136
      %s138 = sphi 0, %s136
      %s139 = sphi 0, %s138
      %s153 = sphi 0, %s139
      %s157 = sphi 0, %s157
      %s159 = sphi 0, %s157
      %s160 = sphi 0, %s159
      %s174 = sphi 0, %s160
      %s178 = sphi 0, %s178
      %s180 = sphi 0, %s178
      %s181 = sphi 0, %s180
      %s195 = sphi 0, %s181
      %s201 = sphi 0, %s203
      %s204 = sphi 0, %s201
      %s205 = sphi 0, %s204
      %s221 = sphi 0, %s205
    $region4: #{tpu_custom_call.1} parent=1 // loop_header_branch
      %21 = sbr.rel (%p19) target = $region8
    $region5: #{tpu_custom_call.1} parent=1 // loop_body
      %s23 = ssub.s32 %s18, 1
      %s24 = ssub.s32 %s18, 2
      %s25 = sadd.s32 %s18, 1
      %s26 = ssub.s32 %s18, %s25
      %p27 = scmp.eq.s32.totalorder %s26, 0
      %s29 = sadd.s32 %s28, 1
      %s30 = scalar_select %p27, %s28, %s29
      %p33 = pneg %p27
      %p34 = scmp.eq.s32.totalorder %s18, 1
      %p35 = por %p33, %p34
      %p36 = scmp.ne.s32.totalorder %s28, %s31
      %p37 = scmp.eq.s32.totalorder %s18, 0
      %p38 = por %p36, %p37
      %p39 = scmp.ne.s32.totalorder %s28, %s31
      %p40 = scmp.eq.s32.totalorder %s23, 1
      %p41 = por %p39, %p40
      %p42 = scmp.ne.s32.totalorder %s31, %s32
      %p43 = scmp.eq.s32.totalorder %s23, 0
      %p44 = por %p42, %p43
      %p45 = scmp.ne.s32.totalorder %s31, %s32
      %p46 = scmp.eq.s32.totalorder %s24, 1
      %p47 = por %p45, %p46
      %p49 = scmp.ne.s32.totalorder %s32, %s48
      %p50 = scmp.eq.s32.totalorder %s24, 0
      %p51 = por %p49, %p50
      %s53 = sadd.s32 %s52, 1
      %p56 = scmp.eq.s32.totalorder %s18, 1
      %p57 = scmp.ne.s32.totalorder %s52, %s54
      %p58 = scmp.eq.s32.totalorder %s18, 0
      %p59 = por %p57, %p58
      %p60 = scmp.ne.s32.totalorder %s52, %s54
      %p61 = scmp.eq.s32.totalorder %s23, 1
      %p62 = por %p60, %p61
      %p63 = scmp.ne.s32.totalorder %s54, %s55
      %p64 = scmp.eq.s32.totalorder %s23, 0
      %p65 = por %p63, %p64
      %p66 = scmp.ne.s32.totalorder %s54, %s55
      %p67 = scmp.eq.s32.totalorder %s24, 1
      %p68 = por %p66, %p67
      %p70 = scmp.ne.s32.totalorder %s55, %s69
      %p71 = scmp.eq.s32.totalorder %s24, 0
      %p72 = por %p70, %p71
      %s74 = sadd.s32 %s73, 1
      %p77 = scmp.eq.s32.totalorder %s18, 1
      %p78 = scmp.ne.s32.totalorder %s73, %s75
      %p79 = scmp.eq.s32.totalorder %s18, 0
      %p80 = por %p78, %p79
      %p81 = scmp.ne.s32.totalorder %s73, %s75
      %p82 = scmp.eq.s32.totalorder %s23, 1
      %p83 = por %p81, %p82
      %p84 = scmp.ne.s32.totalorder %s75, %s76
      %p85 = scmp.eq.s32.totalorder %s23, 0
      %p86 = por %p84, %p85
      %p87 = scmp.ne.s32.totalorder %s75, %s76
      %p88 = scmp.eq.s32.totalorder %s24, 1
      %p89 = por %p87, %p88
      %p91 = scmp.ne.s32.totalorder %s76, %s90
      %p92 = scmp.eq.s32.totalorder %s24, 0
      %p93 = por %p91, %p92
      %s95 = sadd.s32 %s94, 1
      %p98 = scmp.eq.s32.totalorder %s18, 1
      %p99 = scmp.ne.s32.totalorder %s94, %s96
      %p100 = scmp.eq.s32.totalorder %s18, 0
      %p101 = por %p99, %p100
      %p102 = scmp.ne.s32.totalorder %s94, %s96
      %p103 = scmp.eq.s32.totalorder %s23, 1
      %p104 = por %p102, %p103
      %p105 = scmp.ne.s32.totalorder %s96, %s97
      %p106 = scmp.eq.s32.totalorder %s23, 0
      %p107 = por %p105, %p106
      %p108 = scmp.ne.s32.totalorder %s96, %s97
      %p109 = scmp.eq.s32.totalorder %s24, 1
      %p110 = por %p108, %p109
      %p112 = scmp.ne.s32.totalorder %s97, %s111
      %p113 = scmp.eq.s32.totalorder %s24, 0
      %p114 = por %p112, %p113
      %s116 = sadd.s32 %s115, 1
      %p119 = scmp.eq.s32.totalorder %s18, 1
      %p120 = scmp.ne.s32.totalorder %s115, %s117
      %p121 = scmp.eq.s32.totalorder %s18, 0
      %p122 = por %p120, %p121
      %p123 = scmp.ne.s32.totalorder %s115, %s117
      %p124 = scmp.eq.s32.totalorder %s23, 1
      %p125 = por %p123, %p124
      %p126 = scmp.ne.s32.totalorder %s117, %s118
      %p127 = scmp.eq.s32.totalorder %s23, 0
      %p128 = por %p126, %p127
      %p129 = scmp.ne.s32.totalorder %s117, %s118
      %p130 = scmp.eq.s32.totalorder %s24, 1
      %p131 = por %p129, %p130
      %p133 = scmp.ne.s32.totalorder %s118, %s132
      %p134 = scmp.eq.s32.totalorder %s24, 0
      %p135 = por %p133, %p134
      %s137 = sadd.s32 %s136, 1
      %p140 = scmp.eq.s32.totalorder %s18, 1
      %p141 = scmp.ne.s32.totalorder %s136, %s138
      %p142 = scmp.eq.s32.totalorder %s18, 0
      %p143 = por %p141, %p142
      %p144 = scmp.ne.s32.totalorder %s136, %s138
      %p145 = scmp.eq.s32.totalorder %s23, 1
      %p146 = por %p144, %p145
      %p147 = scmp.ne.s32.totalorder %s138, %s139
      %p148 = scmp.eq.s32.totalorder %s23, 0
      %p149 = por %p147, %p148
      %p150 = scmp.ne.s32.totalorder %s138, %s139
      %p151 = scmp.eq.s32.totalorder %s24, 1
      %p152 = por %p150, %p151
      %p154 = scmp.ne.s32.totalorder %s139, %s153
      %p155 = scmp.eq.s32.totalorder %s24, 0
      %p156 = por %p154, %p155
      %s158 = sadd.s32 %s157, 1
      %p161 = scmp.eq.s32.totalorder %s18, 1
      %p162 = scmp.ne.s32.totalorder %s157, %s159
      %p163 = scmp.eq.s32.totalorder %s18, 0
      %p164 = por %p162, %p163
      %p165 = scmp.ne.s32.totalorder %s157, %s159
      %p166 = scmp.eq.s32.totalorder %s23, 1
      %p167 = por %p165, %p166
      %p168 = scmp.ne.s32.totalorder %s159, %s160
      %p169 = scmp.eq.s32.totalorder %s23, 0
      %p170 = por %p168, %p169
      %p171 = scmp.ne.s32.totalorder %s159, %s160
      %p172 = scmp.eq.s32.totalorder %s24, 1
      %p173 = por %p171, %p172
      %p175 = scmp.ne.s32.totalorder %s160, %s174
      %p176 = scmp.eq.s32.totalorder %s24, 0
      %p177 = por %p175, %p176
      %s179 = sadd.s32 %s178, 1
      %p182 = scmp.eq.s32.totalorder %s18, 1
      %p183 = scmp.ne.s32.totalorder %s178, %s180
      %p184 = scmp.eq.s32.totalorder %s18, 0
      %p185 = por %p183, %p184
      %p186 = scmp.ne.s32.totalorder %s178, %s180
      %p187 = scmp.eq.s32.totalorder %s23, 1
      %p188 = por %p186, %p187
      %p189 = scmp.ne.s32.totalorder %s180, %s181
      %p190 = scmp.eq.s32.totalorder %s23, 0
      %p191 = por %p189, %p190
      %p192 = scmp.ne.s32.totalorder %s180, %s181
      %p193 = scmp.eq.s32.totalorder %s24, 1
      %p194 = por %p192, %p193
      %p196 = scmp.ne.s32.totalorder %s181, %s195
      %p197 = scmp.eq.s32.totalorder %s24, 0
      %p198 = por %p196, %p197
      %s199 = ssub.s32 %s18, %s25
      %p200 = scmp.eq.s32.totalorder %s199, 0
      %s202 = sadd.s32 %s201, 1
      %s203 = scalar_select %p200, %s201, %s202
      %p206 = pneg %p200
      %p207 = scmp.eq.s32.totalorder %s18, 1
      %p208 = por %p206, %p207
      %p209 = scmp.ne.s32.totalorder %s201, %s204
      %p210 = scmp.eq.s32.totalorder %s18, 0
      %p211 = por %p209, %p210
      %p212 = scmp.ne.s32.totalorder %s201, %s204
      %p213 = scmp.eq.s32.totalorder %s23, 1
      %p214 = por %p212, %p213
      %p215 = scmp.ne.s32.totalorder %s204, %s205
      %p216 = scmp.eq.s32.totalorder %s23, 0
      %p217 = por %p215, %p216
      %p218 = scmp.ne.s32.totalorder %s204, %s205
      %p219 = scmp.eq.s32.totalorder %s24, 1
      %p220 = por %p218, %p219
      %p222 = scmp.ne.s32.totalorder %s205, %s221
      %p223 = scmp.eq.s32.totalorder %s24, 0
      %p224 = por %p222, %p223
      %p225 = scmp.le.s32.totalorder 1, %s18
      %p226 = scmp.lt.s32.totalorder %s18, 3
      %p227 = pnand %p225, %p226
      %p228 = pneg %p227
      // Predicated region
      $region9: #{tpu_custom_call.1} parent=5 // pred_check
        _
      $region10: #{tpu_custom_call.1} parent=5 // pred_check_branch
        %230 = sbr.rel (%p227) target = $region12
      $region11: #{tpu_custom_call.1} parent=5 // pred_region
        %s231 = ssub.s32 %s18, 1
        // Predicated region
        $region13: #{tpu_custom_call.1} parent=11 // pred_check
          %p232 = pneg %p65
        $region14: #{tpu_custom_call.1} parent=11 // pred_check_branch
          %234 = sbr.rel (%p232) target = $region16
        $region15: #{tpu_custom_call.1} parent=11 // pred_region
          _
        $region16: #{tpu_custom_call.1} parent=11 // pred_fallthru
          _
        // Predicated region
        $region17: #{tpu_custom_call.1} parent=11 // pred_check
          %p235 = pneg %p86
        $region18: #{tpu_custom_call.1} parent=11 // pred_check_branch
          %237 = sbr.rel (%p235) target = $region20
        $region19: #{tpu_custom_call.1} parent=11 // pred_region
          _
        $region20: #{tpu_custom_call.1} parent=11 // pred_fallthru
          _
        // Predicated region
        $region21: #{tpu_custom_call.1} parent=11 // pred_check
          %p238 = pneg %p107
        $region22: #{tpu_custom_call.1} parent=11 // pred_check_branch
          %240 = sbr.rel (%p238) target = $region24
        $region23: #{tpu_custom_call.1} parent=11 // pred_region
          _
        $region24: #{tpu_custom_call.1} parent=11 // pred_fallthru
          _
        // Predicated region
        $region25: #{tpu_custom_call.1} parent=11 // pred_check
          %p241 = pneg %p128
        $region26: #{tpu_custom_call.1} parent=11 // pred_check_branch
          %243 = sbr.rel (%p241) target = $region28
        $region27: #{tpu_custom_call.1} parent=11 // pred_region
          %s245 = ssub.s32 256, 256
          %246 = vsyncadd [#allocation3], %s245
          %s247 = sshll.u32 [#allocation2], 4
          %s248 = int_to_ptr.vmem [resolvable:$true] %s247
          %253 = dma.hbm_to_vmem [thread:$0]  %s4, 256, %s248, [#allocation3], 64, 64, 4
        $region28: #{tpu_custom_call.1} parent=11 // pred_fallthru
          _
        // Predicated region
        $region29: #{tpu_custom_call.1} parent=11 // pred_check
          %p254 = pneg %p149
        $region30: #{tpu_custom_call.1} parent=11 // pred_check_branch
          %256 = sbr.rel (%p254) target = $region32
        $region31: #{tpu_custom_call.1} parent=11 // pred_region
          _
        $region32: #{tpu_custom_call.1} parent=11 // pred_fallthru
          _
        // Predicated region
        $region33: #{tpu_custom_call.1} parent=11 // pred_check
          %p257 = pneg %p170
        $region34: #{tpu_custom_call.1} parent=11 // pred_check_branch
          %259 = sbr.rel (%p257) target = $region36
        $region35: #{tpu_custom_call.1} parent=11 // pred_region
          _
        $region36: #{tpu_custom_call.1} parent=11 // pred_fallthru
          _
        // Predicated region
        $region37: #{tpu_custom_call.1} parent=11 // pred_check
          %p260 = pneg %p191
        $region38: #{tpu_custom_call.1} parent=11 // pred_check_branch
          %262 = sbr.rel (%p260) target = $region40
        $region39: #{tpu_custom_call.1} parent=11 // pred_region
          _
        $region40: #{tpu_custom_call.1} parent=11 // pred_fallthru
          _
      $region12: #{tpu_custom_call.1} parent=5 // pred_fallthru
        _
      %p263 = scmp.lt.s32.totalorder %s18, 2
      // Predicated region
      $region41: #{tpu_custom_call.1} parent=5 // pred_check
        %p264 = pneg %p263
      $region42: #{tpu_custom_call.1} parent=5 // pred_check_branch
        %266 = sbr.rel (%p264) target = $region44
      $region43: #{tpu_custom_call.1} parent=5 // pred_region
        // Predicated region
        $region45: #{tpu_custom_call.1} parent=43 // pred_check
          %p267 = pneg %p38
        $region46: #{tpu_custom_call.1} parent=43 // pred_check_branch
          %269 = sbr.rel (%p267) target = $region48
        $region47: #{tpu_custom_call.1} parent=43 // pred_region
          %p270 = scmp.lt.s32.totalorder %s18, 1
          %s271 = scalar_select %p270, %s18, 1
          %s272 = smul.addr %s271, 8
          %s273 = scalar_lea.vmem %s0, %s272
        $region48: #{tpu_custom_call.1} parent=43 // pred_fallthru
          _
      $region44: #{tpu_custom_call.1} parent=5 // pred_fallthru
        _
      %p274 = scmp.le.s32.totalorder 1, %s18
      %p275 = scmp.lt.s32.totalorder %s18, 3
      %p276 = pnand %p274, %p275
      %p277 = pneg %p276
      // Predicated region
      $region49: #{tpu_custom_call.1} parent=5 // pred_check
        _
      $region50: #{tpu_custom_call.1} parent=5 // pred_check_branch
        %279 = sbr.rel (%p276) target = $region52
      $region51: #{tpu_custom_call.1} parent=5 // pred_region
        %s280 = ssub.s32 %s18, 1
        // Predicated region
        $region53: #{tpu_custom_call.1} parent=51 // pred_check
          %p281 = pneg %p128
        $region54: #{tpu_custom_call.1} parent=51 // pred_check_branch
          %283 = sbr.rel (%p281) target = $region56
        $region55: #{tpu_custom_call.1} parent=51 // pred_region
          %284 = dma.done [#allocation3], 256
        $region56: #{tpu_custom_call.1} parent=51 // pred_fallthru
          _
        %p285 = scmp.lt.s32.totalorder %s23, 1
        %s286 = scalar_select %p285, %s23, 1
        %s287 = smul.addr %s286, 8
        %s288 = scalar_lea.vmem %s0, %s287
        %p289 = pneg %p44
        %p290 = pneg %p41
        %p291 = pneg %p65
        %p292 = pneg %p62
        %p293 = pneg %p86
        %p294 = pneg %p83
        %p295 = pneg %p107
        %p296 = pneg %p104
        %p297 = pneg %p128
        %p298 = pneg %p125
        %p299 = pneg %p149
        %p300 = pneg %p146
        %p301 = pneg %p170
        %p302 = pneg %p167
        %p303 = pneg %p191
        %p304 = pneg %p188
        %p305 = pneg %p217
        %p306 = pneg %p214
        %s307 = sand.u32 %s204, 1
        %s308 = scalar_lea.sflag [#allocation4], %s307
        %s309 = sand.u32 %s204, 1
        %s310 = smul.addr %s309, 8
        %s311 = scalar_lea.vmem [#allocation5], %s310
        %p312 = scmp.lt.s32.totalorder %s23, 1
        %s313 = scalar_select %p312, %s23, 1
        %s314 = smul.addr %s313, 8
        %s315 = scalar_lea.vmem %s0, %s314
        %v317 = vld [vmem:[%s315] sm:$0xff]
        %v318 = vld [vmem:[%s7] sm:$0x3f]
        %v319 = vld [vmem:[%s2] sm:$0x1]
        %v320 = vld [vmem:[%s5] sm:$0x1]
        %v321 = vpack.c.bf16 %v317, %v317
        %v322 = vld [vmem:[%s1] sm:$0xf]
        %v323 = vld [vmem:[%s1 + $0x4] sm:$0xf]
        %v324 = vld [vmem:[%s1 + $0x8] sm:$0xf]
        %v325 = vld [vmem:[%s1 + $0xc] sm:$0xf]
        %v327 = vlaneseq
        %v328 = vshrl.u32 %v327, 7
        %v329 = vsub.s32 0, %v328
        %v330 = vrot.slane %v319, %v329
        %v336 = vunpack.c.l.b16 %v322
        %v337 = vunpack.c.l.b16 %v323
        %v338 = vunpack.c.l.b16 %v324
        %v339 = vunpack.c.l.b16 %v325
        %v340 = vpack.c.b16 %v337, %v336
        %v341 = vpack.c.b16 %v339, %v338
        %vm344 = vcmask 261120
        %v346 = vsel %vm344, %v321, 0
        %348 = vmatprep.subr.bf16.mxu0 0
        %349 = vmatpush1.bf16.msra.mxu0 %v340
        %350 = vmatprep.subr.bf16.mxu0 0
        %351 = vmatpush1.bf16.msra.mxu0 %v341
        %352 = vmatprep.subr.bf16.mxu0 0
        %353 = vmatpush1.bf16.msra.mxu0 0
        %354 = vmatprep.subr.bf16.mxu0 0
        %355 = vmatpush1.bf16.msra.mxu0 0
        %356 = vmatprep.subr.bf16.mxu0 0
        %357 = vmatpush1.bf16.msra.mxu0 0
        %358 = vmatprep.subr.bf16.mxu0 0
        %359 = vmatpush1.bf16.msra.mxu0 0
        %360 = vmatprep.subr.bf16.mxu0 0
        %361 = vmatpush1.bf16.msra.mxu0 0
        %362 = vmatprep.subr.bf16.mxu0 0
        %363 = vmatpush1.bf16.msra.mxu0 0
        %364 = vmatprep.subr.bf16.mxu0 0
        %365 = vmatpush1.bf16.msra.mxu0 0
        %366 = vmatprep.subr.bf16.mxu0 0
        %367 = vmatpush1.bf16.msra.mxu0 0
        %368 = vmatprep.subr.bf16.mxu0 0
        %369 = vmatpush1.bf16.msra.mxu0 0
        %370 = vmatprep.subr.bf16.mxu0 0
        %371 = vmatpush1.bf16.msra.mxu0 0
        %372 = vmatprep.subr.bf16.mxu0 0
        %373 = vmatpush1.bf16.msra.mxu0 0
        %374 = vmatprep.subr.bf16.mxu0 0
        %375 = vmatpush1.bf16.msra.mxu0 0
        %376 = vmatprep.subr.bf16.mxu0 0
        %377 = vmatpush1.bf16.msra.mxu0 0
        %378 = vmatprep.subr.bf16.mxu0 0
        %379 = vmatpush1.bf16.msra.mxu0 0
        %380 = vmatprep.mubr.bf16.mxu0 0
        %381 = vmatmul.mubr.bf16.gmra.mrb[0].mxu0 %v346
        %v382 = vpop.f32.mrb[0].mxu0
        %v383 = vadd.f32 %v330, %v382
        %v384 = vpop.f32.mrb[0].mxu0
        %v385 = vpop.f32.mrb[0].mxu0
        %v386 = vpop.f32.mrb[0].mxu0
        %387 = vdwg.mxu0
        %389 = vrot.lane.b32.xlu0 %v383, 120
        %v390 = vpop.permute.xlu0 %389
        %392 = vrot.lane.b32.xlu0 %v383, 112
        %v393 = vpop.permute.xlu0 %392
        %395 = vrot.lane.b32.xlu0 %v383, 104
        %v396 = vpop.permute.xlu0 %395
        %v398 = vcombine.low %v383, %v393
        %v399 = vcombine.high %v383, %v393
        %v401 = vunpack.c.l.s4 1983009808
        %v402 = vunpack.c.0.s8 %v401
        %v403 = vlaneseq
        %v404 = vshrl.u32 %v403, 7
        %v405 = vsub.s32 %v402, %v404
        %v406 = vrot.slane %v398, %v405
        %v408 = vunpack.c.l.s4 1983009808
        %v409 = vunpack.c.0.s8 %v408
        %v410 = vlaneseq
        %v411 = vshrl.u32 %v410, 7
        %v412 = vsub.s32 %v409, %v411
        %v413 = vrot.slane %v399, %v412
        %v414 = vcombine.low %v390, %v396
        %v415 = vcombine.high %v390, %v396
        %v417 = vunpack.c.l.s4 1983009808
        %v418 = vunpack.c.0.s8 %v417
        %v419 = vlaneseq
        %v420 = vshrl.u32 %v419, 7
        %v421 = vsub.s32 %v418, %v420
        %v422 = vrot.slane %v414, %v421
        %v424 = vunpack.c.l.s4 1983009808
        %v425 = vunpack.c.0.s8 %v424
        %v426 = vlaneseq
        %v427 = vshrl.u32 %v426, 7
        %v428 = vsub.s32 %v425, %v427
        %v429 = vrot.slane %v415, %v428
        %v430 = vcombine.low %v406, %v422
        %v431 = vcombine.high %v406, %v422
        %v433 = vunpack.c.l.s4 1934713408
        %v434 = vunpack.c.0.s8 %v433
        %v435 = vlaneseq
        %v436 = vshrl.u32 %v435, 7
        %v437 = vsub.s32 %v434, %v436
        %v438 = vrot.slane %v430, %v437
        %v440 = vunpack.c.l.s4 1934713408
        %v441 = vunpack.c.0.s8 %v440
        %v442 = vlaneseq
        %v443 = vshrl.u32 %v442, 7
        %v444 = vsub.s32 %v441, %v443
        %v445 = vrot.slane %v431, %v444
        %v446 = vcombine.low %v413, %v429
        %v447 = vcombine.high %v413, %v429
        %v449 = vunpack.c.l.s4 1934713408
        %v450 = vunpack.c.0.s8 %v449
        %v451 = vlaneseq
        %v452 = vshrl.u32 %v451, 7
        %v453 = vsub.s32 %v450, %v452
        %v454 = vrot.slane %v446, %v453
        %v456 = vunpack.c.l.s4 1934713408
        %v457 = vunpack.c.0.s8 %v456
        %v458 = vlaneseq
        %v459 = vshrl.u32 %v458, 7
        %v460 = vsub.s32 %v457, %v459
        %v461 = vrot.slane %v447, %v460
        %v462 = vcombine.high %v438, 0.0
        %v463 = vcombine.high %v445, 0.0
        %v464 = vcombine.high %v454, 0.0
        %v465 = vcombine.high %v461, 0.0
        %v466 = vcombine.low %v438, %v445
        %v468 = vunpack.c.l.s4 1983009808
        %v469 = vunpack.c.0.s8 %v468
        %v470 = vlaneseq
        %v471 = vshrl.u32 %v470, 7
        %v472 = vsub.s32 %v469, %v471
        %v473 = vrot.slane %v466, %v472
        %v474 = vcombine.low %v462, %v463
        %v476 = vunpack.c.l.s4 1983009808
        %v477 = vunpack.c.0.s8 %v476
        %v478 = vlaneseq
        %v479 = vshrl.u32 %v478, 7
        %v480 = vsub.s32 %v477, %v479
        %v481 = vrot.slane %v474, %v480
        %v482 = vcombine.low %v454, %v461
        %v484 = vunpack.c.l.s4 1983009808
        %v485 = vunpack.c.0.s8 %v484
        %v486 = vlaneseq
        %v487 = vshrl.u32 %v486, 7
        %v488 = vsub.s32 %v485, %v487
        %v489 = vrot.slane %v482, %v488
        %v490 = vcombine.low %v464, %v465
        %v492 = vunpack.c.l.s4 1983009808
        %v493 = vunpack.c.0.s8 %v492
        %v494 = vlaneseq
        %v495 = vshrl.u32 %v494, 7
        %v496 = vsub.s32 %v493, %v495
        %v497 = vrot.slane %v490, %v496
        %v498 = vcombine.low %v473, %v481
        %v499 = vcombine.high %v473, %v481
        %v501 = vunpack.c.l.s4 1934713408
        %v502 = vunpack.c.0.s8 %v501
        %v503 = vlaneseq
        %v504 = vshrl.u32 %v503, 7
        %v505 = vsub.s32 %v502, %v504
        %v506 = vrot.slane %v498, %v505
        %v508 = vunpack.c.l.s4 1934713408
        %v509 = vunpack.c.0.s8 %v508
        %v510 = vlaneseq
        %v511 = vshrl.u32 %v510, 7
        %v512 = vsub.s32 %v509, %v511
        %v513 = vrot.slane %v499, %v512
        %v514 = vcombine.low %v489, %v497
        %v515 = vcombine.high %v489, %v497
        %v517 = vunpack.c.l.s4 1934713408
        %v518 = vunpack.c.0.s8 %v517
        %v519 = vlaneseq
        %v520 = vshrl.u32 %v519, 7
        %v521 = vsub.s32 %v518, %v520
        %v522 = vrot.slane %v514, %v521
        %v524 = vunpack.c.l.s4 1934713408
        %v525 = vunpack.c.0.s8 %v524
        %v526 = vlaneseq
        %v527 = vshrl.u32 %v526, 7
        %v528 = vsub.s32 %v525, %v527
        %v529 = vrot.slane %v515, %v528
        %v530 = vcombine.low %v506, %v522
        %v531 = vcombine.high %v506, %v522
        %v532 = vcombine.low %v513, %v529
        %v533 = vcombine.high %v513, %v529
        %v534 = vpack.c.bf16 %v530, %v530
        %v535 = vpack.c.bf16 %v531, %v531
        %v536 = vpack.c.bf16 %v532, %v532
        %v537 = vpack.c.bf16 %v533, %v533
        %538 = vrot.lane.b32.xlu0 %v383, 96
        %v539 = vpop.permute.xlu0 %538
        %540 = vrot.lane.b32.xlu0 %v390, 96
        %v541 = vpop.permute.xlu0 %540
        %542 = vrot.lane.b32.xlu0 %v393, 96
        %v543 = vpop.permute.xlu0 %542
        %544 = vrot.lane.b32.xlu0 %v396, 96
        %v545 = vpop.permute.xlu0 %544
        %v550 = vcombine.low %v539, %v543
        %v551 = vcombine.high %v539, %v543
        %v553 = vunpack.c.l.s4 1983009808
        %v554 = vunpack.c.0.s8 %v553
        %v555 = vlaneseq
        %v556 = vshrl.u32 %v555, 7
        %v557 = vsub.s32 %v554, %v556
        %v558 = vrot.slane %v550, %v557
        %v560 = vunpack.c.l.s4 1983009808
        %v561 = vunpack.c.0.s8 %v560
        %v562 = vlaneseq
        %v563 = vshrl.u32 %v562, 7
        %v564 = vsub.s32 %v561, %v563
        %v565 = vrot.slane %v551, %v564
        %v566 = vcombine.low %v541, %v545
        %v567 = vcombine.high %v541, %v545
        %v569 = vunpack.c.l.s4 1983009808
        %v570 = vunpack.c.0.s8 %v569
        %v571 = vlaneseq
        %v572 = vshrl.u32 %v571, 7
        %v573 = vsub.s32 %v570, %v572
        %v574 = vrot.slane %v566, %v573
        %v576 = vunpack.c.l.s4 1983009808
        %v577 = vunpack.c.0.s8 %v576
        %v578 = vlaneseq
        %v579 = vshrl.u32 %v578, 7
        %v580 = vsub.s32 %v577, %v579
        %v581 = vrot.slane %v567, %v580
        %v582 = vcombine.low %v558, %v574
        %v583 = vcombine.high %v558, %v574
        %v585 = vunpack.c.l.s4 1934713408
        %v586 = vunpack.c.0.s8 %v585
        %v587 = vlaneseq
        %v588 = vshrl.u32 %v587, 7
        %v589 = vsub.s32 %v586, %v588
        %v590 = vrot.slane %v582, %v589
        %v592 = vunpack.c.l.s4 1934713408
        %v593 = vunpack.c.0.s8 %v592
        %v594 = vlaneseq
        %v595 = vshrl.u32 %v594, 7
        %v596 = vsub.s32 %v593, %v595
        %v597 = vrot.slane %v583, %v596
        %v598 = vcombine.low %v565, %v581
        %v599 = vcombine.high %v565, %v581
        %v601 = vunpack.c.l.s4 1934713408
        %v602 = vunpack.c.0.s8 %v601
        %v603 = vlaneseq
        %v604 = vshrl.u32 %v603, 7
        %v605 = vsub.s32 %v602, %v604
        %v606 = vrot.slane %v598, %v605
        %v608 = vunpack.c.l.s4 1934713408
        %v609 = vunpack.c.0.s8 %v608
        %v610 = vlaneseq
        %v611 = vshrl.u32 %v610, 7
        %v612 = vsub.s32 %v609, %v611
        %v613 = vrot.slane %v599, %v612
        %v614 = vcombine.high %v590, 0.0
        %v615 = vcombine.high %v597, 0.0
        %v616 = vcombine.high %v606, 0.0
        %v617 = vcombine.high %v613, 0.0
        %v618 = vcombine.low %v590, %v597
        %v620 = vunpack.c.l.s4 1983009808
        %v621 = vunpack.c.0.s8 %v620
        %v622 = vlaneseq
        %v623 = vshrl.u32 %v622, 7
        %v624 = vsub.s32 %v621, %v623
        %v625 = vrot.slane %v618, %v624
        %v626 = vcombine.low %v614, %v615
        %v628 = vunpack.c.l.s4 1983009808
        %v629 = vunpack.c.0.s8 %v628
        %v630 = vlaneseq
        %v631 = vshrl.u32 %v630, 7
        %v632 = vsub.s32 %v629, %v631
        %v633 = vrot.slane %v626, %v632
        %v634 = vcombine.low %v606, %v613
        %v636 = vunpack.c.l.s4 1983009808
        %v637 = vunpack.c.0.s8 %v636
        %v638 = vlaneseq
        %v639 = vshrl.u32 %v638, 7
        %v640 = vsub.s32 %v637, %v639
        %v641 = vrot.slane %v634, %v640
        %v642 = vcombine.low %v616, %v617
        %v644 = vunpack.c.l.s4 1983009808
        %v645 = vunpack.c.0.s8 %v644
        %v646 = vlaneseq
        %v647 = vshrl.u32 %v646, 7
        %v648 = vsub.s32 %v645, %v647
        %v649 = vrot.slane %v642, %v648
        %v650 = vcombine.low %v625, %v633
        %v651 = vcombine.high %v625, %v633
        %v653 = vunpack.c.l.s4 1934713408
        %v654 = vunpack.c.0.s8 %v653
        %v655 = vlaneseq
        %v656 = vshrl.u32 %v655, 7
        %v657 = vsub.s32 %v654, %v656
        %v658 = vrot.slane %v650, %v657
        %v660 = vunpack.c.l.s4 1934713408
        %v661 = vunpack.c.0.s8 %v660
        %v662 = vlaneseq
        %v663 = vshrl.u32 %v662, 7
        %v664 = vsub.s32 %v661, %v663
        %v665 = vrot.slane %v651, %v664
        %v666 = vcombine.low %v641, %v649
        %v667 = vcombine.high %v641, %v649
        %v669 = vunpack.c.l.s4 1934713408
        %v670 = vunpack.c.0.s8 %v669
        %v671 = vlaneseq
        %v672 = vshrl.u32 %v671, 7
        %v673 = vsub.s32 %v670, %v672
        %v674 = vrot.slane %v666, %v673
        %v676 = vunpack.c.l.s4 1934713408
        %v677 = vunpack.c.0.s8 %v676
        %v678 = vlaneseq
        %v679 = vshrl.u32 %v678, 7
        %v680 = vsub.s32 %v677, %v679
        %v681 = vrot.slane %v667, %v680
        %v682 = vcombine.low %v658, %v674
        %v683 = vcombine.high %v658, %v674
        %v684 = vcombine.low %v665, %v681
        %v685 = vcombine.high %v665, %v681
        %v686 = vpack.c.bf16 %v682, %v682
        %v687 = vpack.c.bf16 %v683, %v683
        %v688 = vpack.c.bf16 %v684, %v684
        %v689 = vpack.c.bf16 %v685, %v685
        %690 = vrot.lane.b32.xlu0 %v383, 64
        %v691 = vpop.permute.xlu0 %690
        %692 = vrot.lane.b32.xlu0 %v390, 64
        %v693 = vpop.permute.xlu0 %692
        %694 = vrot.lane.b32.xlu0 %v393, 64
        %v695 = vpop.permute.xlu0 %694
        %696 = vrot.lane.b32.xlu0 %v396, 64
        %v697 = vpop.permute.xlu0 %696
        %v702 = vcombine.low %v691, %v695
        %v703 = vcombine.high %v691, %v695
        %v705 = vunpack.c.l.s4 1983009808
        %v706 = vunpack.c.0.s8 %v705
        %v707 = vlaneseq
        %v708 = vshrl.u32 %v707, 7
        %v709 = vsub.s32 %v706, %v708
        %v710 = vrot.slane %v702, %v709
        %v712 = vunpack.c.l.s4 1983009808
        %v713 = vunpack.c.0.s8 %v712
        %v714 = vlaneseq
        %v715 = vshrl.u32 %v714, 7
        %v716 = vsub.s32 %v713, %v715
        %v717 = vrot.slane %v703, %v716
        %v718 = vcombine.low %v693, %v697
        %v719 = vcombine.high %v693, %v697
        %v721 = vunpack.c.l.s4 1983009808
        %v722 = vunpack.c.0.s8 %v721
        %v723 = vlaneseq
        %v724 = vshrl.u32 %v723, 7
        %v725 = vsub.s32 %v722, %v724
        %v726 = vrot.slane %v718, %v725
        %v728 = vunpack.c.l.s4 1983009808
        %v729 = vunpack.c.0.s8 %v728
        %v730 = vlaneseq
        %v731 = vshrl.u32 %v730, 7
        %v732 = vsub.s32 %v729, %v731
        %v733 = vrot.slane %v719, %v732
        %v734 = vcombine.low %v710, %v726
        %v735 = vcombine.high %v710, %v726
        %v737 = vunpack.c.l.s4 1934713408
        %v738 = vunpack.c.0.s8 %v737
        %v739 = vlaneseq
        %v740 = vshrl.u32 %v739, 7
        %v741 = vsub.s32 %v738, %v740
        %v742 = vrot.slane %v734, %v741
        %v744 = vunpack.c.l.s4 1934713408
        %v745 = vunpack.c.0.s8 %v744
        %v746 = vlaneseq
        %v747 = vshrl.u32 %v746, 7
        %v748 = vsub.s32 %v745, %v747
        %v749 = vrot.slane %v735, %v748
        %v750 = vcombine.low %v717, %v733
        %v751 = vcombine.high %v717, %v733
        %v753 = vunpack.c.l.s4 1934713408
        %v754 = vunpack.c.0.s8 %v753
        %v755 = vlaneseq
        %v756 = vshrl.u32 %v755, 7
        %v757 = vsub.s32 %v754, %v756
        %v758 = vrot.slane %v750, %v757
        %v760 = vunpack.c.l.s4 1934713408
        %v761 = vunpack.c.0.s8 %v760
        %v762 = vlaneseq
        %v763 = vshrl.u32 %v762, 7
        %v764 = vsub.s32 %v761, %v763
        %v765 = vrot.slane %v751, %v764
        %v766 = vcombine.high %v742, 0.0
        %v767 = vcombine.high %v749, 0.0
        %v768 = vcombine.high %v758, 0.0
        %v769 = vcombine.high %v765, 0.0
        %v770 = vcombine.low %v742, %v749
        %v772 = vunpack.c.l.s4 1983009808
        %v773 = vunpack.c.0.s8 %v772
        %v774 = vlaneseq
        %v775 = vshrl.u32 %v774, 7
        %v776 = vsub.s32 %v773, %v775
        %v777 = vrot.slane %v770, %v776
        %v778 = vcombine.low %v766, %v767
        %v780 = vunpack.c.l.s4 1983009808
        %v781 = vunpack.c.0.s8 %v780
        %v782 = vlaneseq
        %v783 = vshrl.u32 %v782, 7
        %v784 = vsub.s32 %v781, %v783
        %v785 = vrot.slane %v778, %v784
        %v786 = vcombine.low %v758, %v765
        %v788 = vunpack.c.l.s4 1983009808
        %v789 = vunpack.c.0.s8 %v788
        %v790 = vlaneseq
        %v791 = vshrl.u32 %v790, 7
        %v792 = vsub.s32 %v789, %v791
        %v793 = vrot.slane %v786, %v792
        %v794 = vcombine.low %v768, %v769
        %v796 = vunpack.c.l.s4 1983009808
        %v797 = vunpack.c.0.s8 %v796
        %v798 = vlaneseq
        %v799 = vshrl.u32 %v798, 7
        %v800 = vsub.s32 %v797, %v799
        %v801 = vrot.slane %v794, %v800
        %v802 = vcombine.low %v777, %v785
        %v803 = vcombine.high %v777, %v785
        %v805 = vunpack.c.l.s4 1934713408
        %v806 = vunpack.c.0.s8 %v805
        %v807 = vlaneseq
        %v808 = vshrl.u32 %v807, 7
        %v809 = vsub.s32 %v806, %v808
        %v810 = vrot.slane %v802, %v809
        %v812 = vunpack.c.l.s4 1934713408
        %v813 = vunpack.c.0.s8 %v812
        %v814 = vlaneseq
        %v815 = vshrl.u32 %v814, 7
        %v816 = vsub.s32 %v813, %v815
        %v817 = vrot.slane %v803, %v816
        %v818 = vcombine.low %v793, %v801
        %v819 = vcombine.high %v793, %v801
        %v821 = vunpack.c.l.s4 1934713408
        %v822 = vunpack.c.0.s8 %v821
        %v823 = vlaneseq
        %v824 = vshrl.u32 %v823, 7
        %v825 = vsub.s32 %v822, %v824
        %v826 = vrot.slane %v818, %v825
        %v828 = vunpack.c.l.s4 1934713408
        %v829 = vunpack.c.0.s8 %v828
        %v830 = vlaneseq
        %v831 = vshrl.u32 %v830, 7
        %v832 = vsub.s32 %v829, %v831
        %v833 = vrot.slane %v819, %v832
        %v834 = vcombine.low %v810, %v826
        %v835 = vcombine.high %v810, %v826
        %v836 = vcombine.low %v817, %v833
        %v837 = vcombine.high %v817, %v833
        %v838 = vpack.c.bf16 %v834, %v834
        %v839 = vpack.c.bf16 %v835, %v835
        %v840 = vpack.c.bf16 %v836, %v836
        %v841 = vpack.c.bf16 %v837, %v837
        %vm842 = vcmask 64512
        %v844 = vsel %vm842, %v534, 0
        %v847 = vsel %vm842, %v686, 0
        %849 = vmatprep.subr.bf16.mxu0 0
        %850 = vmatpush1.bf16.xpose.msra.mxu0 %v847
        %851 = vmatprep.subr.bf16.mxu0 0
        %852 = vmatpush1.bf16.xpose.msra.mxu0 0
        %853 = vmatprep.subr.bf16.mxu0 0
        %854 = vmatpush1.bf16.xpose.msra.mxu0 0
        %855 = vmatprep.subr.bf16.mxu0 0
        %856 = vmatpush1.bf16.xpose.msra.mxu0 0
        %857 = vmatprep.subr.bf16.mxu0 0
        %858 = vmatpush1.bf16.xpose.msra.mxu0 0
        %859 = vmatprep.subr.bf16.mxu0 0
        %860 = vmatpush1.bf16.xpose.msra.mxu0 0
        %861 = vmatprep.subr.bf16.mxu0 0
        %862 = vmatpush1.bf16.xpose.msra.mxu0 0
        %863 = vmatprep.subr.bf16.mxu0 0
        %864 = vmatpush1.bf16.xpose.msra.mxu0 0
        %865 = vmatprep.subr.bf16.mxu0 0
        %866 = vmatpush1.bf16.xpose.msra.mxu0 0
        %867 = vmatprep.subr.bf16.mxu0 0
        %868 = vmatpush1.bf16.xpose.msra.mxu0 0
        %869 = vmatprep.subr.bf16.mxu0 0
        %870 = vmatpush1.bf16.xpose.msra.mxu0 0
        %871 = vmatprep.subr.bf16.mxu0 0
        %872 = vmatpush1.bf16.xpose.msra.mxu0 0
        %873 = vmatprep.subr.bf16.mxu0 0
        %874 = vmatpush1.bf16.xpose.msra.mxu0 0
        %875 = vmatprep.subr.bf16.mxu0 0
        %876 = vmatpush1.bf16.xpose.msra.mxu0 0
        %877 = vmatprep.subr.bf16.mxu0 0
        %878 = vmatpush1.bf16.xpose.msra.mxu0 0
        %879 = vmatprep.subr.bf16.mxu0 0
        %880 = vmatpush1.bf16.xpose.msra.mxu0 0
        %881 = vmatprep.mubr.bf16.mxu0 0
        %882 = vmatmul.mubr.bf16.gmra.mrb[0].mxu0 %v844
        %v883 = vpop.f32.mrb[0].mxu0
        %v884 = vadd.f32 0.0, %v883
        %v885 = vpop.f32.mrb[0].mxu0
        %v886 = vpop.f32.mrb[0].mxu0
        %v887 = vpop.f32.mrb[0].mxu0
        %888 = vdwg.mxu0
        %v890 = vsel %vm842, %v535, 0
        %v893 = vsel %vm842, %v687, 0
        %895 = vmatprep.subr.bf16.mxu0 0
        %896 = vmatpush1.bf16.xpose.msra.mxu0 %v893
        %897 = vmatprep.subr.bf16.mxu0 0
        %898 = vmatpush1.bf16.xpose.msra.mxu0 0
        %899 = vmatprep.subr.bf16.mxu0 0
        %900 = vmatpush1.bf16.xpose.msra.mxu0 0
        %901 = vmatprep.subr.bf16.mxu0 0
        %902 = vmatpush1.bf16.xpose.msra.mxu0 0
        %903 = vmatprep.subr.bf16.mxu0 0
        %904 = vmatpush1.bf16.xpose.msra.mxu0 0
        %905 = vmatprep.subr.bf16.mxu0 0
        %906 = vmatpush1.bf16.xpose.msra.mxu0 0
        %907 = vmatprep.subr.bf16.mxu0 0
        %908 = vmatpush1.bf16.xpose.msra.mxu0 0
        %909 = vmatprep.subr.bf16.mxu0 0
        %910 = vmatpush1.bf16.xpose.msra.mxu0 0
        %911 = vmatprep.subr.bf16.mxu0 0
        %912 = vmatpush1.bf16.xpose.msra.mxu0 0
        %913 = vmatprep.subr.bf16.mxu0 0
        %914 = vmatpush1.bf16.xpose.msra.mxu0 0
        %915 = vmatprep.subr.bf16.mxu0 0
        %916 = vmatpush1.bf16.xpose.msra.mxu0 0
        %917 = vmatprep.subr.bf16.mxu0 0
        %918 = vmatpush1.bf16.xpose.msra.mxu0 0
        %919 = vmatprep.subr.bf16.mxu0 0
        %920 = vmatpush1.bf16.xpose.msra.mxu0 0
        %921 = vmatprep.subr.bf16.mxu0 0
        %922 = vmatpush1.bf16.xpose.msra.mxu0 0
        %923 = vmatprep.subr.bf16.mxu0 0
        %924 = vmatpush1.bf16.xpose.msra.mxu0 0
        %925 = vmatprep.subr.bf16.mxu0 0
        %926 = vmatpush1.bf16.xpose.msra.mxu0 0
        %927 = vmatprep.mubr.bf16.mxu0 0
        %928 = vmatmul.mubr.bf16.gmra.mrb[0].mxu0 %v890
        %v929 = vpop.f32.mrb[0].mxu0
        %v930 = vadd.f32 0.0, %v929
        %v931 = vpop.f32.mrb[0].mxu0
        %v932 = vpop.f32.mrb[0].mxu0
        %v933 = vpop.f32.mrb[0].mxu0
        %934 = vdwg.mxu0
        %v936 = vsel %vm842, %v536, 0
        %v939 = vsel %vm842, %v688, 0
        %941 = vmatprep.subr.bf16.mxu0 0
        %942 = vmatpush1.bf16.xpose.msra.mxu0 %v939
        %943 = vmatprep.subr.bf16.mxu0 0
        %944 = vmatpush1.bf16.xpose.msra.mxu0 0
        %945 = vmatprep.subr.bf16.mxu0 0
        %946 = vmatpush1.bf16.xpose.msra.mxu0 0
        %947 = vmatprep.subr.bf16.mxu0 0
        %948 = vmatpush1.bf16.xpose.msra.mxu0 0
        %949 = vmatprep.subr.bf16.mxu0 0
        %950 = vmatpush1.bf16.xpose.msra.mxu0 0
        %951 = vmatprep.subr.bf16.mxu0 0
        %952 = vmatpush1.bf16.xpose.msra.mxu0 0
        %953 = vmatprep.subr.bf16.mxu0 0
        %954 = vmatpush1.bf16.xpose.msra.mxu0 0
        %955 = vmatprep.subr.bf16.mxu0 0
        %956 = vmatpush1.bf16.xpose.msra.mxu0 0
        %957 = vmatprep.subr.bf16.mxu0 0
        %958 = vmatpush1.bf16.xpose.msra.mxu0 0
        %959 = vmatprep.subr.bf16.mxu0 0
        %960 = vmatpush1.bf16.xpose.msra.mxu0 0
        %961 = vmatprep.subr.bf16.mxu0 0
        %962 = vmatpush1.bf16.xpose.msra.mxu0 0
        %963 = vmatprep.subr.bf16.mxu0 0
        %964 = vmatpush1.bf16.xpose.msra.mxu0 0
        %965 = vmatprep.subr.bf16.mxu0 0
        %966 = vmatpush1.bf16.xpose.msra.mxu0 0
        %967 = vmatprep.subr.bf16.mxu0 0
        %968 = vmatpush1.bf16.xpose.msra.mxu0 0
        %969 = vmatprep.subr.bf16.mxu0 0
        %970 = vmatpush1.bf16.xpose.msra.mxu0 0
        %971 = vmatprep.subr.bf16.mxu0 0
        %972 = vmatpush1.bf16.xpose.msra.mxu0 0
        %973 = vmatprep.mubr.bf16.mxu0 0
        %974 = vmatmul.mubr.bf16.gmra.mrb[0].mxu0 %v936
        %v975 = vpop.f32.mrb[0].mxu0
        %v976 = vadd.f32 0.0, %v975
        %v977 = vpop.f32.mrb[0].mxu0
        %v978 = vpop.f32.mrb[0].mxu0
        %v979 = vpop.f32.mrb[0].mxu0
        %980 = vdwg.mxu0
        %v982 = vsel %vm842, %v537, 0
        %v985 = vsel %vm842, %v689, 0
        %987 = vmatprep.subr.bf16.mxu0 0
        %988 = vmatpush1.bf16.xpose.msra.mxu0 %v985
        %989 = vmatprep.subr.bf16.mxu0 0
        %990 = vmatpush1.bf16.xpose.msra.mxu0 0
        %991 = vmatprep.subr.bf16.mxu0 0
        %992 = vmatpush1.bf16.xpose.msra.mxu0 0
        %993 = vmatprep.subr.bf16.mxu0 0
        %994 = vmatpush1.bf16.xpose.msra.mxu0 0
        %995 = vmatprep.subr.bf16.mxu0 0
        %996 = vmatpush1.bf16.xpose.msra.mxu0 0
        %997 = vmatprep.subr.bf16.mxu0 0
        %998 = vmatpush1.bf16.xpose.msra.mxu0 0
        %999 = vmatprep.subr.bf16.mxu0 0
        %1000 = vmatpush1.bf16.xpose.msra.mxu0 0
        %1001 = vmatprep.subr.bf16.mxu0 0
        %1002 = vmatpush1.bf16.xpose.msra.mxu0 0
        %1003 = vmatprep.subr.bf16.mxu0 0
        %1004 = vmatpush1.bf16.xpose.msra.mxu0 0
        %1005 = vmatprep.subr.bf16.mxu0 0
        %1006 = vmatpush1.bf16.xpose.msra.mxu0 0
        %1007 = vmatprep.subr.bf16.mxu0 0
        %1008 = vmatpush1.bf16.xpose.msra.mxu0 0
        %1009 = vmatprep.subr.bf16.mxu0 0
        %1010 = vmatpush1.bf16.xpose.msra.mxu0 0
        %1011 = vmatprep.subr.bf16.mxu0 0
        %1012 = vmatpush1.bf16.xpose.msra.mxu0 0
        %1013 = vmatprep.subr.bf16.mxu0 0
        %1014 = vmatpush1.bf16.xpose.msra.mxu0 0
        %1015 = vmatprep.subr.bf16.mxu0 0
        %1016 = vmatpush1.bf16.xpose.msra.mxu0 0
        %1017 = vmatprep.subr.bf16.mxu0 0
        %1018 = vmatpush1.bf16.xpose.msra.mxu0 0
        %1019 = vmatprep.mubr.bf16.mxu0 0
        %1020 = vmatmul.mubr.bf16.gmra.mrb[0].mxu0 %v982
        %v1021 = vpop.f32.mrb[0].mxu0
        %v1022 = vadd.f32 0.0, %v1021
        %v1023 = vpop.f32.mrb[0].mxu0
        %v1024 = vpop.f32.mrb[0].mxu0
        %v1025 = vpop.f32.mrb[0].mxu0
        %1026 = vdwg.mxu0
        %v1027 = vmul.f32 %v884, 0.35355338
        %v1028 = vmul.f32 %v930, 0.35355338
        %v1029 = vmul.f32 %v976, 0.35355338
        %v1030 = vmul.f32 %v1022, 0.35355338
        %v1031 = vsel %vm842, %v1027, -inf
        %1032 = vmax.xlane.f32.xlu0 %v1031
        %v1033 = vpop.xlane.xlu0 %1032
        %v1034 = vsel %vm842, %v1028, -inf
        %1035 = vmax.xlane.f32.xlu0 %v1034
        %v1036 = vpop.xlane.xlu0 %1035
        %v1037 = vsel %vm842, %v1029, -inf
        %1038 = vmax.xlane.f32.xlu0 %v1037
        %v1039 = vpop.xlane.xlu0 %1038
        %v1040 = vsel %vm842, %v1030, -inf
        %1041 = vmax.xlane.f32.xlu0 %v1040
        %v1042 = vpop.xlane.xlu0 %1041
        %v1043 = vsub.f32 %v1027, %v1033
        %v1044 = vsub.f32 %v1028, %v1036
        %v1045 = vsub.f32 %v1029, %v1039
        %v1046 = vsub.f32 %v1030, %v1042
        %v1047 = vmul.f32 %v1043, 1.442695
        %v1048 = vpow.pop %v1047
        %v1049 = vmul.f32 %v1044, 1.442695
        %v1050 = vpow.pop %v1049
        %v1051 = vmul.f32 %v1045, 1.442695
        %v1052 = vpow.pop %v1051
        %v1053 = vmul.f32 %v1046, 1.442695
        %v1054 = vpow.pop %v1053
        %v1055 = vsel %vm842, %v1048, 0.0
        %1056 = vadd.xlane.f32.xlu0 %v1055
        %v1057 = vpop.xlane.xlu0 %1056
        %v1058 = vsel %vm842, %v1050, 0.0
        %1059 = vadd.xlane.f32.xlu0 %v1058
        %v1060 = vpop.xlane.xlu0 %1059
        %v1061 = vsel %vm842, %v1052, 0.0
        %1062 = vadd.xlane.f32.xlu0 %v1061
        %v1063 = vpop.xlane.xlu0 %1062
        %v1064 = vsel %vm842, %v1054, 0.0
        %1065 = vadd.xlane.f32.xlu0 %v1064
        %v1066 = vpop.xlane.xlu0 %1065
        %v1067 = vrcp.pop %v1057
        %v1068 = vrcp.pop %v1060
        %v1069 = vrcp.pop %v1063
        %v1070 = vrcp.pop %v1066
        %v1071 = vmul.f32 %v1048, %v1067
        %v1072 = vmul.f32 %v1050, %v1068
        %v1073 = vmul.f32 %v1052, %v1069
        %v1074 = vmul.f32 %v1054, %v1070
        %v1075 = vpack.c.bf16 %v1071, %v1071
        %v1076 = vpack.c.bf16 %v1072, %v1072
        %v1077 = vpack.c.bf16 %v1073, %v1073
        %v1078 = vpack.c.bf16 %v1074, %v1074
        %v1080 = vsel %vm842, %v1075, 0
        %vm1082 = vcmask 1043456
        %v1084 = vsel %vm1082, %v838, 0
        %1086 = vmatprep.subr.bf16.mxu0 0
        %1087 = vmatpush1.bf16.msra.mxu0 %v1084
        %1088 = vmatprep.subr.bf16.mxu0 0
        %1089 = vmatpush1.bf16.msra.mxu0 0
        %1090 = vmatprep.subr.bf16.mxu0 0
        %1091 = vmatpush1.bf16.msra.mxu0 0
        %1092 = vmatprep.subr.bf16.mxu0 0
        %1093 = vmatpush1.bf16.msra.mxu0 0
        %1094 = vmatprep.subr.bf16.mxu0 0
        %1095 = vmatpush1.bf16.msra.mxu0 0
        %1096 = vmatprep.subr.bf16.mxu0 0
        %1097 = vmatpush1.bf16.msra.mxu0 0
        %1098 = vmatprep.subr.bf16.mxu0 0
        %1099 = vmatpush1.bf16.msra.mxu0 0
        %1100 = vmatprep.subr.bf16.mxu0 0
        %1101 = vmatpush1.bf16.msra.mxu0 0
        %1102 = vmatprep.subr.bf16.mxu0 0
        %1103 = vmatpush1.bf16.msra.mxu0 0
        %1104 = vmatprep.subr.bf16.mxu0 0
        %1105 = vmatpush1.bf16.msra.mxu0 0
        %1106 = vmatprep.subr.bf16.mxu0 0
        %1107 = vmatpush1.bf16.msra.mxu0 0
        %1108 = vmatprep.subr.bf16.mxu0 0
        %1109 = vmatpush1.bf16.msra.mxu0 0
        %1110 = vmatprep.subr.bf16.mxu0 0
        %1111 = vmatpush1.bf16.msra.mxu0 0
        %1112 = vmatprep.subr.bf16.mxu0 0
        %1113 = vmatpush1.bf16.msra.mxu0 0
        %1114 = vmatprep.subr.bf16.mxu0 0
        %1115 = vmatpush1.bf16.msra.mxu0 0
        %1116 = vmatprep.subr.bf16.mxu0 0
        %1117 = vmatpush1.bf16.msra.mxu0 0
        %1118 = vmatprep.mubr.bf16.mxu0 0
        %1119 = vmatmul.mubr.bf16.gmra.mrb[0].mxu0 %v1080
        %v1120 = vpop.f32.mrb[0].mxu0
        %v1121 = vadd.f32 0.0, %v1120
        %v1122 = vpop.f32.mrb[0].mxu0
        %v1123 = vpop.f32.mrb[0].mxu0
        %v1124 = vpop.f32.mrb[0].mxu0
        %1125 = vdwg.mxu0
        %v1127 = vsel %vm842, %v1076, 0
        %v1130 = vsel %vm1082, %v839, 0
        %1132 = vmatprep.subr.bf16.mxu0 0
        %1133 = vmatpush1.bf16.msra.mxu0 %v1130
        %1134 = vmatprep.subr.bf16.mxu0 0
        %1135 = vmatpush1.bf16.msra.mxu0 0
        %1136 = vmatprep.subr.bf16.mxu0 0
        %1137 = vmatpush1.bf16.msra.mxu0 0
        %1138 = vmatprep.subr.bf16.mxu0 0
        %1139 = vmatpush1.bf16.msra.mxu0 0
        %1140 = vmatprep.subr.bf16.mxu0 0
        %1141 = vmatpush1.bf16.msra.mxu0 0
        %1142 = vmatprep.subr.bf16.mxu0 0
        %1143 = vmatpush1.bf16.msra.mxu0 0
        %1144 = vmatprep.subr.bf16.mxu0 0
        %1145 = vmatpush1.bf16.msra.mxu0 0
        %1146 = vmatprep.subr.bf16.mxu0 0
        %1147 = vmatpush1.bf16.msra.mxu0 0
        %1148 = vmatprep.subr.bf16.mxu0 0
        %1149 = vmatpush1.bf16.msra.mxu0 0
        %1150 = vmatprep.subr.bf16.mxu0 0
        %1151 = vmatpush1.bf16.msra.mxu0 0
        %1152 = vmatprep.subr.bf16.mxu0 0
        %1153 = vmatpush1.bf16.msra.mxu0 0
        %1154 = vmatprep.subr.bf16.mxu0 0
        %1155 = vmatpush1.bf16.msra.mxu0 0
        %1156 = vmatprep.subr.bf16.mxu0 0
        %1157 = vmatpush1.bf16.msra.mxu0 0
        %1158 = vmatprep.subr.bf16.mxu0 0
        %1159 = vmatpush1.bf16.msra.mxu0 0
        %1160 = vmatprep.subr.bf16.mxu0 0
        %1161 = vmatpush1.bf16.msra.mxu0 0
        %1162 = vmatprep.subr.bf16.mxu0 0
        %1163 = vmatpush1.bf16.msra.mxu0 0
        %1164 = vmatprep.mubr.bf16.mxu0 0
        %1165 = vmatmul.mubr.bf16.gmra.mrb[0].mxu0 %v1127
        %v1166 = vpop.f32.mrb[0].mxu0
        %v1167 = vadd.f32 0.0, %v1166
        %v1168 = vpop.f32.mrb[0].mxu0
        %v1169 = vpop.f32.mrb[0].mxu0
        %v1170 = vpop.f32.mrb[0].mxu0
        %1171 = vdwg.mxu0
        %v1173 = vsel %vm842, %v1077, 0
        %v1176 = vsel %vm1082, %v840, 0
        %1178 = vmatprep.subr.bf16.mxu0 0
        %1179 = vmatpush1.bf16.msra.mxu0 %v1176
        %1180 = vmatprep.subr.bf16.mxu0 0
        %1181 = vmatpush1.bf16.msra.mxu0 0
        %1182 = vmatprep.subr.bf16.mxu0 0
        %1183 = vmatpush1.bf16.msra.mxu0 0
        %1184 = vmatprep.subr.bf16.mxu0 0
        %1185 = vmatpush1.bf16.msra.mxu0 0
        %1186 = vmatprep.subr.bf16.mxu0 0
        %1187 = vmatpush1.bf16.msra.mxu0 0
        %1188 = vmatprep.subr.bf16.mxu0 0
        %1189 = vmatpush1.bf16.msra.mxu0 0
        %1190 = vmatprep.subr.bf16.mxu0 0
        %1191 = vmatpush1.bf16.msra.mxu0 0
        %1192 = vmatprep.subr.bf16.mxu0 0
        %1193 = vmatpush1.bf16.msra.mxu0 0
        %1194 = vmatprep.subr.bf16.mxu0 0
        %1195 = vmatpush1.bf16.msra.mxu0 0
        %1196 = vmatprep.subr.bf16.mxu0 0
        %1197 = vmatpush1.bf16.msra.mxu0 0
        %1198 = vmatprep.subr.bf16.mxu0 0
        %1199 = vmatpush1.bf16.msra.mxu0 0
        %1200 = vmatprep.subr.bf16.mxu0 0
        %1201 = vmatpush1.bf16.msra.mxu0 0
        %1202 = vmatprep.subr.bf16.mxu0 0
        %1203 = vmatpush1.bf16.msra.mxu0 0
        %1204 = vmatprep.subr.bf16.mxu0 0
        %1205 = vmatpush1.bf16.msra.mxu0 0
        %1206 = vmatprep.subr.bf16.mxu0 0
        %1207 = vmatpush1.bf16.msra.mxu0 0
        %1208 = vmatprep.subr.bf16.mxu0 0
        %1209 = vmatpush1.bf16.msra.mxu0 0
        %1210 = vmatprep.mubr.bf16.mxu0 0
        %1211 = vmatmul.mubr.bf16.gmra.mrb[0].mxu0 %v1173
        %v1212 = vpop.f32.mrb[0].mxu0
        %v1213 = vadd.f32 0.0, %v1212
        %v1214 = vpop.f32.mrb[0].mxu0
        %v1215 = vpop.f32.mrb[0].mxu0
        %v1216 = vpop.f32.mrb[0].mxu0
        %1217 = vdwg.mxu0
        %v1219 = vsel %vm842, %v1078, 0
        %v1222 = vsel %vm1082, %v841, 0
        %1224 = vmatprep.subr.bf16.mxu0 0
        %1225 = vmatpush1.bf16.msra.mxu0 %v1222
        %1226 = vmatprep.subr.bf16.mxu0 0
        %1227 = vmatpush1.bf16.msra.mxu0 0
        %1228 = vmatprep.subr.bf16.mxu0 0
        %1229 = vmatpush1.bf16.msra.mxu0 0
        %1230 = vmatprep.subr.bf16.mxu0 0
        %1231 = vmatpush1.bf16.msra.mxu0 0
        %1232 = vmatprep.subr.bf16.mxu0 0
        %1233 = vmatpush1.bf16.msra.mxu0 0
        %1234 = vmatprep.subr.bf16.mxu0 0
        %1235 = vmatpush1.bf16.msra.mxu0 0
        %1236 = vmatprep.subr.bf16.mxu0 0
        %1237 = vmatpush1.bf16.msra.mxu0 0
        %1238 = vmatprep.subr.bf16.mxu0 0
        %1239 = vmatpush1.bf16.msra.mxu0 0
        %1240 = vmatprep.subr.bf16.mxu0 0
        %1241 = vmatpush1.bf16.msra.mxu0 0
        %1242 = vmatprep.subr.bf16.mxu0 0
        %1243 = vmatpush1.bf16.msra.mxu0 0
        %1244 = vmatprep.subr.bf16.mxu0 0
        %1245 = vmatpush1.bf16.msra.mxu0 0
        %1246 = vmatprep.subr.bf16.mxu0 0
        %1247 = vmatpush1.bf16.msra.mxu0 0
        %1248 = vmatprep.subr.bf16.mxu0 0
        %1249 = vmatpush1.bf16.msra.mxu0 0
        %1250 = vmatprep.subr.bf16.mxu0 0
        %1251 = vmatpush1.bf16.msra.mxu0 0
        %1252 = vmatprep.subr.bf16.mxu0 0
        %1253 = vmatpush1.bf16.msra.mxu0 0
        %1254 = vmatprep.subr.bf16.mxu0 0
        %1255 = vmatpush1.bf16.msra.mxu0 0
        %1256 = vmatprep.mubr.bf16.mxu0 0
        %1257 = vmatmul.mubr.bf16.gmra.mrb[0].mxu0 %v1219
        %v1258 = vpop.f32.mrb[0].mxu0
        %v1259 = vadd.f32 0.0, %v1258
        %v1260 = vpop.f32.mrb[0].mxu0
        %v1261 = vpop.f32.mrb[0].mxu0
        %v1262 = vpop.f32.mrb[0].mxu0
        %1263 = vdwg.mxu0
        %v1264 = vcombine.low %v1121, %v1213
        %v1265 = vcombine.high %v1121, %v1213
        %v1267 = vunpack.c.l.s4 1983009808
        %v1268 = vunpack.c.0.s8 %v1267
        %v1269 = vlaneseq
        %v1270 = vshrl.u32 %v1269, 7
        %v1271 = vsub.s32 %v1268, %v1270
        %v1272 = vrot.slane %v1264, %v1271
        %v1274 = vunpack.c.l.s4 1983009808
        %v1275 = vunpack.c.0.s8 %v1274
        %v1276 = vlaneseq
        %v1277 = vshrl.u32 %v1276, 7
        %v1278 = vsub.s32 %v1275, %v1277
        %v1279 = vrot.slane %v1265, %v1278
        %v1280 = vcombine.low %v1167, %v1259
        %v1281 = vcombine.high %v1167, %v1259
        %v1283 = vunpack.c.l.s4 1983009808
        %v1284 = vunpack.c.0.s8 %v1283
        %v1285 = vlaneseq
        %v1286 = vshrl.u32 %v1285, 7
        %v1287 = vsub.s32 %v1284, %v1286
        %v1288 = vrot.slane %v1280, %v1287
        %v1290 = vunpack.c.l.s4 1983009808
        %v1291 = vunpack.c.0.s8 %v1290
        %v1292 = vlaneseq
        %v1293 = vshrl.u32 %v1292, 7
        %v1294 = vsub.s32 %v1291, %v1293
        %v1295 = vrot.slane %v1281, %v1294
        %v1296 = vcombine.low %v1272, %v1288
        %v1297 = vcombine.high %v1272, %v1288
        %v1299 = vunpack.c.l.s4 1934713408
        %v1300 = vunpack.c.0.s8 %v1299
        %v1301 = vlaneseq
        %v1302 = vshrl.u32 %v1301, 7
        %v1303 = vsub.s32 %v1300, %v1302
        %v1304 = vrot.slane %v1296, %v1303
        %v1306 = vunpack.c.l.s4 1934713408
        %v1307 = vunpack.c.0.s8 %v1306
        %v1308 = vlaneseq
        %v1309 = vshrl.u32 %v1308, 7
        %v1310 = vsub.s32 %v1307, %v1309
        %v1311 = vrot.slane %v1297, %v1310
        %v1312 = vcombine.low %v1279, %v1295
        %v1313 = vcombine.high %v1279, %v1295
        %v1315 = vunpack.c.l.s4 1934713408
        %v1316 = vunpack.c.0.s8 %v1315
        %v1317 = vlaneseq
        %v1318 = vshrl.u32 %v1317, 7
        %v1319 = vsub.s32 %v1316, %v1318
        %v1320 = vrot.slane %v1312, %v1319
        %v1322 = vunpack.c.l.s4 1934713408
        %v1323 = vunpack.c.0.s8 %v1322
        %v1324 = vlaneseq
        %v1325 = vshrl.u32 %v1324, 7
        %v1326 = vsub.s32 %v1323, %v1325
        %v1327 = vrot.slane %v1313, %v1326
        %v1328 = vcombine.high %v1304, 0.0
        %v1329 = vcombine.high %v1311, 0.0
        %v1330 = vcombine.high %v1320, 0.0
        %v1331 = vcombine.high %v1327, 0.0
        %v1332 = vcombine.low %v1304, %v1311
        %v1334 = vunpack.c.l.s4 1983009808
        %v1335 = vunpack.c.0.s8 %v1334
        %v1336 = vlaneseq
        %v1337 = vshrl.u32 %v1336, 7
        %v1338 = vsub.s32 %v1335, %v1337
        %v1339 = vrot.slane %v1332, %v1338
        %v1340 = vcombine.low %v1328, %v1329
        %v1342 = vunpack.c.l.s4 1983009808
        %v1343 = vunpack.c.0.s8 %v1342
        %v1344 = vlaneseq
        %v1345 = vshrl.u32 %v1344, 7
        %v1346 = vsub.s32 %v1343, %v1345
        %v1347 = vrot.slane %v1340, %v1346
        %v1348 = vcombine.low %v1320, %v1327
        %v1350 = vunpack.c.l.s4 1983009808
        %v1351 = vunpack.c.0.s8 %v1350
        %v1352 = vlaneseq
        %v1353 = vshrl.u32 %v1352, 7
        %v1354 = vsub.s32 %v1351, %v1353
        %v1355 = vrot.slane %v1348, %v1354
        %v1356 = vcombine.low %v1330, %v1331
        %v1358 = vunpack.c.l.s4 1983009808
        %v1359 = vunpack.c.0.s8 %v1358
        %v1360 = vlaneseq
        %v1361 = vshrl.u32 %v1360, 7
        %v1362 = vsub.s32 %v1359, %v1361
        %v1363 = vrot.slane %v1356, %v1362
        %v1364 = vcombine.low %v1339, %v1347
        %v1365 = vcombine.high %v1339, %v1347
        %v1367 = vunpack.c.l.s4 1934713408
        %v1368 = vunpack.c.0.s8 %v1367
        %v1369 = vlaneseq
        %v1370 = vshrl.u32 %v1369, 7
        %v1371 = vsub.s32 %v1368, %v1370
        %v1372 = vrot.slane %v1364, %v1371
        %v1374 = vunpack.c.l.s4 1934713408
        %v1375 = vunpack.c.0.s8 %v1374
        %v1376 = vlaneseq
        %v1377 = vshrl.u32 %v1376, 7
        %v1378 = vsub.s32 %v1375, %v1377
        %v1379 = vrot.slane %v1365, %v1378
        %v1380 = vcombine.low %v1355, %v1363
        %v1381 = vcombine.high %v1355, %v1363
        %v1383 = vunpack.c.l.s4 1934713408
        %v1384 = vunpack.c.0.s8 %v1383
        %v1385 = vlaneseq
        %v1386 = vshrl.u32 %v1385, 7
        %v1387 = vsub.s32 %v1384, %v1386
        %v1388 = vrot.slane %v1380, %v1387
        %v1390 = vunpack.c.l.s4 1934713408
        %v1391 = vunpack.c.0.s8 %v1390
        %v1392 = vlaneseq
        %v1393 = vshrl.u32 %v1392, 7
        %v1394 = vsub.s32 %v1391, %v1393
        %v1395 = vrot.slane %v1381, %v1394
        %v1396 = vcombine.low %v1372, %v1388
        %v1397 = vcombine.high %v1372, %v1388
        %v1398 = vcombine.low %v1379, %v1395
        %v1399 = vcombine.high %v1379, %v1395
        %1401 = vrot.lane.b32.xlu0 %v1397, 8
        %v1402 = vpop.permute.xlu0 %1401
        %1405 = vrot.lane.b32.xlu0 %v1398, 16
        %v1406 = vpop.permute.xlu0 %1405
        %1409 = vrot.lane.b32.xlu0 %v1399, 24
        %v1410 = vpop.permute.xlu0 %1409
        %v1412 = vsel %vm842, %v1396, %v1402
        %vm1413 = vcmask 130048
        %v1414 = vsel %vm1413, %v1412, %v1406
        %vm1415 = vcmask 195584
        %v1416 = vsel %vm1415, %v1414, %v1410
        %v1417 = vpack.c.bf16 %v1416, %v1416
        %v1418 = vld [vmem:[%s3] sm:$0xf]
        %v1419 = vld [vmem:[%s3 + $0x4] sm:$0xf]
        %v1420 = vld [vmem:[%s3 + $0x8] sm:$0xf]
        %v1421 = vld [vmem:[%s3 + $0xc] sm:$0xf]
        %v1422 = vlaneseq
        %v1423 = vshrl.u32 %v1422, 7
        %v1424 = vsub.s32 0, %v1423
        %v1425 = vrot.slane %v318, %v1424
        %v1430 = vunpack.c.l.b16 %v1418
        %v1431 = vunpack.c.l.b16 %v1419
        %v1432 = vunpack.c.l.b16 %v1420
        %v1433 = vunpack.c.l.b16 %v1421
        %v1434 = vpack.c.b16 %v1431, %v1430
        %v1435 = vpack.c.b16 %v1433, %v1432
        %v1439 = vsel %vm344, %v1417, 0
        %1441 = vmatprep.subr.bf16.mxu0 0
        %1442 = vmatpush1.bf16.msra.mxu0 %v1434
        %1443 = vmatprep.subr.bf16.mxu0 0
        %1444 = vmatpush1.bf16.msra.mxu0 %v1435
        %1445 = vmatprep.subr.bf16.mxu0 0
        %1446 = vmatpush1.bf16.msra.mxu0 0
        %1447 = vmatprep.subr.bf16.mxu0 0
        %1448 = vmatpush1.bf16.msra.mxu0 0
        %1449 = vmatprep.subr.bf16.mxu0 0
        %1450 = vmatpush1.bf16.msra.mxu0 0
        %1451 = vmatprep.subr.bf16.mxu0 0
        %1452 = vmatpush1.bf16.msra.mxu0 0
        %1453 = vmatprep.subr.bf16.mxu0 0
        %1454 = vmatpush1.bf16.msra.mxu0 0
        %1455 = vmatprep.subr.bf16.mxu0 0
        %1456 = vmatpush1.bf16.msra.mxu0 0
        %1457 = vmatprep.subr.bf16.mxu0 0
        %1458 = vmatpush1.bf16.msra.mxu0 0
        %1459 = vmatprep.subr.bf16.mxu0 0
        %1460 = vmatpush1.bf16.msra.mxu0 0
        %1461 = vmatprep.subr.bf16.mxu0 0
        %1462 = vmatpush1.bf16.msra.mxu0 0
        %1463 = vmatprep.subr.bf16.mxu0 0
        %1464 = vmatpush1.bf16.msra.mxu0 0
        %1465 = vmatprep.subr.bf16.mxu0 0
        %1466 = vmatpush1.bf16.msra.mxu0 0
        %1467 = vmatprep.subr.bf16.mxu0 0
        %1468 = vmatpush1.bf16.msra.mxu0 0
        %1469 = vmatprep.subr.bf16.mxu0 0
        %1470 = vmatpush1.bf16.msra.mxu0 0
        %1471 = vmatprep.subr.bf16.mxu0 0
        %1472 = vmatpush1.bf16.msra.mxu0 0
        %1473 = vmatprep.mubr.bf16.mxu0 0
        %1474 = vmatmul.mubr.bf16.gmra.mrb[0].mxu0 %v1439
        %v1475 = vpop.f32.mrb[0].mxu0
        %v1476 = vadd.f32 %v1425, %v1475
        %v1477 = vpop.f32.mrb[0].mxu0
        %v1478 = vpop.f32.mrb[0].mxu0
        %v1479 = vpop.f32.mrb[0].mxu0
        %1480 = vdwg.mxu0
        %v1481 = vadd.f32 %v317, %v1476
        %v1482 = vsel %vm344, %v1481, 0.0
        %1483 = vadd.xlane.f32.xlu0 %v1482
        %v1484 = vpop.xlane.xlu0 %1483
        %v1485 = vrcp.pop 32.0
        %v1486 = vmul.f32 %v1484, %v1485
        %v1487 = vsub.f32 %v1481, %v1486
        %v1488 = vmul.f32 %v1487, %v1487
        %v1489 = vsel %vm344, %v1488, 0.0
        %1490 = vadd.xlane.f32.xlu0 %v1489
        %v1491 = vpop.xlane.xlu0 %1490
        %v1492 = vmul.f32 %v1491, %v1485
        %v1493 = vadd.f32 %v1492, 1e-05
        %v1494 = vrsqrt.pop %v1493
        %v1495 = vmul.f32 %v1487, %v1494
        %v1496 = vlaneseq
        %v1497 = vshrl.u32 %v1496, 7
        %v1498 = vsub.s32 1, %v1497
        %v1499 = vrot.slane %v318, %v1498
        %v1500 = vmul.f32 %v1495, %v1499
        %v1501 = vlaneseq
        %v1502 = vshrl.u32 %v1501, 7
        %v1503 = vsub.s32 2, %v1502
        %v1504 = vrot.slane %v318, %v1503
        %v1505 = vadd.f32 %v1500, %v1504
        %v1506 = vpack.c.bf16 %v1505, %v1505
        %v1507 = vld [vmem:[#allocation2] sm:$0xf]
        %v1508 = vld [vmem:[#allocation2 + $0x4] sm:$0xf]
        %v1509 = vld [vmem:[#allocation2 + $0x8] sm:$0xf]
        %v1510 = vld [vmem:[#allocation2 + $0xc] sm:$0xf]
        %v1512 = vlaneseq
        %v1513 = vshrl.u32 %v1512, 7
        %v1514 = vsub.s32 0, %v1513
        %v1515 = vrot.slane %v320, %v1514
        %v1521 = vunpack.c.l.b16 %v1507
        %v1522 = vunpack.c.l.b16 %v1508
        %v1523 = vunpack.c.l.b16 %v1509
        %v1524 = vunpack.c.l.b16 %v1510
        %v1525 = vpack.c.b16 %v1522, %v1521
        %v1526 = vpack.c.b16 %v1524, %v1523
        %v1530 = vsel %vm344, %v1506, 0
        %1532 = vmatprep.subr.bf16.mxu0 0
        %1533 = vmatpush1.bf16.msra.mxu0 %v1525
        %1534 = vmatprep.subr.bf16.mxu0 0
        %1535 = vmatpush1.bf16.msra.mxu0 %v1526
        %1536 = vmatprep.subr.bf16.mxu0 0
        %1537 = vmatpush1.bf16.msra.mxu0 0
        %1538 = vmatprep.subr.bf16.mxu0 0
        %1539 = vmatpush1.bf16.msra.mxu0 0
        %1540 = vmatprep.subr.bf16.mxu0 0
        %1541 = vmatpush1.bf16.msra.mxu0 0
        %1542 = vmatprep.subr.bf16.mxu0 0
        %1543 = vmatpush1.bf16.msra.mxu0 0
        %1544 = vmatprep.subr.bf16.mxu0 0
        %1545 = vmatpush1.bf16.msra.mxu0 0
        %1546 = vmatprep.subr.bf16.mxu0 0
        %1547 = vmatpush1.bf16.msra.mxu0 0
        %1548 = vmatprep.subr.bf16.mxu0 0
        %1549 = vmatpush1.bf16.msra.mxu0 0
        %1550 = vmatprep.subr.bf16.mxu0 0
        %1551 = vmatpush1.bf16.msra.mxu0 0
        %1552 = vmatprep.subr.bf16.mxu0 0
        %1553 = vmatpush1.bf16.msra.mxu0 0
        %1554 = vmatprep.subr.bf16.mxu0 0
        %1555 = vmatpush1.bf16.msra.mxu0 0
        %1556 = vmatprep.subr.bf16.mxu0 0
        %1557 = vmatpush1.bf16.msra.mxu0 0
        %1558 = vmatprep.subr.bf16.mxu0 0
        %1559 = vmatpush1.bf16.msra.mxu0 0
        %1560 = vmatprep.subr.bf16.mxu0 0
        %1561 = vmatpush1.bf16.msra.mxu0 0
        %1562 = vmatprep.subr.bf16.mxu0 0
        %1563 = vmatpush1.bf16.msra.mxu0 0
        %1564 = vmatprep.mubr.bf16.mxu0 0
        %1565 = vmatmul.mubr.bf16.gmra.mrb[0].mxu0 %v1530
        %v1566 = vpop.f32.mrb[0].mxu0
        %v1567 = vadd.f32 %v1515, %v1566
        %v1568 = vpop.f32.mrb[0].mxu0
        %v1569 = vpop.f32.mrb[0].mxu0
        %v1570 = vpop.f32.mrb[0].mxu0
        %1571 = vdwg.mxu0
        %v1572 = vmul.f32 %v1567, 0.5
        %v1573 = vmul.f32 %v1567, 0.70710677
        %v1574 = verf.f32.pop %v1573
        %v1575 = vadd.f32 %v1574, 1.0
        %v1576 = vmul.f32 %v1572, %v1575
        %v1577 = vpack.c.bf16 %v1576, %v1576
        %v1578 = vld [vmem:[%s6] sm:$0xf]
        %v1579 = vld [vmem:[%s6 + $0x4] sm:$0xf]
        %v1580 = vld [vmem:[%s6 + $0x8] sm:$0xf]
        %v1581 = vld [vmem:[%s6 + $0xc] sm:$0xf]
        %v1582 = vld [vmem:[%s6 + $0x10] sm:$0xf]
        %v1583 = vld [vmem:[%s6 + $0x14] sm:$0xf]
        %v1584 = vld [vmem:[%s6 + $0x18] sm:$0xf]
        %v1585 = vld [vmem:[%s6 + $0x1c] sm:$0xf]
        %v1586 = vlaneseq
        %v1587 = vshrl.u32 %v1586, 7
        %v1588 = vsub.s32 3, %v1587
        %v1589 = vrot.slane %v318, %v1588
        %v1598 = vunpack.c.l.b16 %v1578
        %v1599 = vunpack.c.l.b16 %v1579
        %v1600 = vunpack.c.l.b16 %v1580
        %v1601 = vunpack.c.l.b16 %v1581
        %v1602 = vunpack.c.l.b16 %v1582
        %v1603 = vunpack.c.l.b16 %v1583
        %v1604 = vunpack.c.l.b16 %v1584
        %v1605 = vunpack.c.l.b16 %v1585
        %v1606 = vpack.c.b16 %v1599, %v1598
        %v1607 = vpack.c.b16 %v1601, %v1600
        %v1608 = vpack.c.b16 %v1603, %v1602
        %v1609 = vpack.c.b16 %v1605, %v1604
        %vm1614 = vcmask 523264
        %v1616 = vsel %vm1614, %v1577, 0
        %1618 = vmatprep.subr.bf16.mxu0 0
        %1619 = vmatpush1.bf16.msra.mxu0 %v1606
        %1620 = vmatprep.subr.bf16.mxu0 0
        %1621 = vmatpush1.bf16.msra.mxu0 %v1607
        %1622 = vmatprep.subr.bf16.mxu0 0
        %1623 = vmatpush1.bf16.msra.mxu0 %v1608
        %1624 = vmatprep.subr.bf16.mxu0 0
        %1625 = vmatpush1.bf16.msra.mxu0 %v1609
        %1626 = vmatprep.subr.bf16.mxu0 0
        %1627 = vmatpush1.bf16.msra.mxu0 0
        %1628 = vmatprep.subr.bf16.mxu0 0
        %1629 = vmatpush1.bf16.msra.mxu0 0
        %1630 = vmatprep.subr.bf16.mxu0 0
        %1631 = vmatpush1.bf16.msra.mxu0 0
        %1632 = vmatprep.subr.bf16.mxu0 0
        %1633 = vmatpush1.bf16.msra.mxu0 0
        %1634 = vmatprep.subr.bf16.mxu0 0
        %1635 = vmatpush1.bf16.msra.mxu0 0
        %1636 = vmatprep.subr.bf16.mxu0 0
        %1637 = vmatpush1.bf16.msra.mxu0 0
        %1638 = vmatprep.subr.bf16.mxu0 0
        %1639 = vmatpush1.bf16.msra.mxu0 0
        %1640 = vmatprep.subr.bf16.mxu0 0
        %1641 = vmatpush1.bf16.msra.mxu0 0
        %1642 = vmatprep.subr.bf16.mxu0 0
        %1643 = vmatpush1.bf16.msra.mxu0 0
        %1644 = vmatprep.subr.bf16.mxu0 0
        %1645 = vmatpush1.bf16.msra.mxu0 0
        %1646 = vmatprep.subr.bf16.mxu0 0
        %1647 = vmatpush1.bf16.msra.mxu0 0
        %1648 = vmatprep.subr.bf16.mxu0 0
        %1649 = vmatpush1.bf16.msra.mxu0 0
        %1650 = vmatprep.mubr.bf16.mxu0 0
        %1651 = vmatmul.mubr.bf16.gmra.mrb[0].mxu0 %v1616
        %v1652 = vpop.f32.mrb[0].mxu0
        %v1653 = vadd.f32 %v1589, %v1652
        %v1654 = vpop.f32.mrb[0].mxu0
        %v1655 = vpop.f32.mrb[0].mxu0
        %v1656 = vpop.f32.mrb[0].mxu0
        %1657 = vdwg.mxu0
        %v1658 = vadd.f32 %v1505, %v1653
        %v1659 = vsel %vm344, %v1658, 0.0
        %1660 = vadd.xlane.f32.xlu0 %v1659
        %v1661 = vpop.xlane.xlu0 %1660
        %v1662 = vmul.f32 %v1661, %v1485
        %v1663 = vsub.f32 %v1658, %v1662
        %v1664 = vmul.f32 %v1663, %v1663
        %v1665 = vsel %vm344, %v1664, 0.0
        %1666 = vadd.xlane.f32.xlu0 %v1665
        %v1667 = vpop.xlane.xlu0 %1666
        %v1668 = vmul.f32 %v1667, %v1485
        %v1669 = vadd.f32 %v1668, 1e-05
        %v1670 = vrsqrt.pop %v1669
        %v1671 = vmul.f32 %v1663, %v1670
        %v1672 = vlaneseq
        %v1673 = vshrl.u32 %v1672, 7
        %v1674 = vsub.s32 4, %v1673
        %v1675 = vrot.slane %v318, %v1674
        %v1676 = vmul.f32 %v1671, %v1675
        %v1677 = vlaneseq
        %v1678 = vshrl.u32 %v1677, 7
        %v1679 = vsub.s32 5, %v1678
        %v1680 = vrot.slane %v318, %v1679
        %v1681 = vadd.f32 %v1676, %v1680
        %1682 = vst.msk [vmem:[%s311] sm:$0xff] %vm344, %v1681
        %s1683 = sand.u32 %s204, 1
        %s1684 = scalar_lea.sflag [#allocation4], %s1683
        %s1685 = sand.u32 %s204, 1
        %s1686 = smul.addr %s1685, 8
        %s1687 = scalar_lea.vmem [#allocation5], %s1686
        // Predicated region
        $region57: #{tpu_custom_call.1} parent=51 // pred_check
          %p1688 = pneg %p214
        $region58: #{tpu_custom_call.1} parent=51 // pred_check_branch
          %1690 = sbr.rel (%p1688) target = $region60
        $region59: #{tpu_custom_call.1} parent=51 // pred_region
          %s1692 = ssub.s32 128, 128
          %1693 = vsyncadd %s1684, %s1692
          %s1694 = smul.addr %s23, 128
          %s1695 = scalar_lea.hbm %s8, %s1694
          %s1697 = sshll.u32 %s1687, 4
          %s1698 = int_to_ptr.vmem [resolvable:$true] %s1697
          %1700 = dma.vmem_to_hbm [thread:$0]  %s1698, 128, %s1695, %s1684
        $region60: #{tpu_custom_call.1} parent=51 // pred_fallthru
          _
      $region52: #{tpu_custom_call.1} parent=5 // pred_fallthru
        _
      %p1701 = scmp.le.s32.totalorder 2, %s18
      // Predicated region
      $region61: #{tpu_custom_call.1} parent=5 // pred_check
        %p1702 = pneg %p1701
      $region62: #{tpu_custom_call.1} parent=5 // pred_check_branch
        %1704 = sbr.rel (%p1702) target = $region64
      $region63: #{tpu_custom_call.1} parent=5 // pred_region
        %s1705 = ssub.s32 %s18, 2
        // Predicated region
        $region65: #{tpu_custom_call.1} parent=63 // pred_check
          %p1706 = pneg %p220
        $region66: #{tpu_custom_call.1} parent=63 // pred_check_branch
          %1708 = sbr.rel (%p1706) target = $region68
        $region67: #{tpu_custom_call.1} parent=63 // pred_region
          %s1709 = sand.u32 %s205, 1
          %s1710 = scalar_lea.sflag [#allocation4], %s1709
          %s1711 = sand.u32 %s205, 1
          %s1712 = smul.addr %s1711, 8
          %s1713 = scalar_lea.vmem [#allocation5], %s1712
          %1714 = dma.done %s1710, 128
        $region68: #{tpu_custom_call.1} parent=63 // pred_fallthru
          _
      $region64: #{tpu_custom_call.1} parent=5 // pred_fallthru
        _
    $region6: #{tpu_custom_call.1} parent=1 // loop_footer
      %s22 = sadd.s32 1, %s18
    $region7: #{tpu_custom_call.1} parent=1 // loop_footer_branch
      %17 = sbr.rel target = $region3
    $region8: #{tpu_custom_call.1} parent=1 // loop_exit
      _
    %1715 = vsyncpa [#allocation3], 1
    %s1716 = scalar_lea.sflag [#allocation3], 1
    %1717 = vsyncpa %s1716, 1
    %1718 = vsyncpa [#allocation4], 1
    %s1719 = scalar_lea.sflag [#allocation4], 1
    %1720 = vsyncpa %s1719, 1

</llo_original>
